<compile_context>
chip_gen: v7x
topology: tpu7x:2x2x1
jax: 0.10.0
libtpu: 0.0.40
codegen_flags: <defaults>
</compile_context>

<pallas_src>
import functools

import numpy as np
import jax
import jax.numpy as jnp
from jax.experimental import pallas as pl
from jax.experimental.pallas import tpu as pltpu


# --------------------------------------------------------------------------
# Fused kernel: forward_diffusion + full improved_sampling loop, one image.
# --------------------------------------------------------------------------

def _diffusion_forward_kernel(alpha_fd_ref, alphas_ref, clean_ref, noisy_ref,
                              mask_ref, w1_ref, b1_ref, temb1_ref,
                              w2_ref, b2_ref, temb2_ref,
                              o_ref, taps1_ref, hbo_ref, taps2_ref,
                              *, width, timesteps):
    c_pad = clean_ref.shape[1]            # padded channel count (multiple of 8)
    hw = clean_ref.shape[2]               # H*W, lane axis
    hid = w1_ref.shape[0]                 # hidden channels (multiple of 8)

    # ---- forward_diffusion prologue (fused; was a separate pallas_call) ----
    a_fd = alpha_fd_ref[0]
    anchor = a_fd * noisy_ref[0] + (1.0 - a_fd) * clean_ref[0]     # (c_pad, hw)

    # ---- loop-invariant hoists: weights, masks, bias / t-emb broadcasts ----
    w1 = w1_ref[...]                                               # (hid, 9*c_pad)
    w2 = w2_ref[...]                                               # (2*c_pad, 9*2*hid)
    b1 = jnp.broadcast_to(b1_ref[...], (hid, hw))
    temb1 = jnp.broadcast_to(temb1_ref[...], (hid, hw))
    b2 = jnp.broadcast_to(b2_ref[...], (c_pad, hw))
    temb2 = jnp.broadcast_to(temb2_ref[...], (c_pad, hw))
    masks = [mask_ref[k] for k in range(9)]                        # each (1, hw)
    offs = [dy * width + dx for dy in (-1, 0, 1) for dx in (-1, 0, 1)]

    def build_taps(h, taps_ref, rows):
        # Stack the 9 rolled+masked taps along sublanes (tap-major order,
        # matching the host-side weight packing) so the conv is a single
        # K = 9*rows dot.  Offsets k*rows are multiples of 8 -> aligned stores.
        for k in range(9):
            off = offs[k]
            if off == 0:
                tap = h                                            # centre tap
            else:
                tap = pltpu.roll(h, shift=(-off) % hw, axis=1) * masks[k]
            taps_ref[k * rows:(k + 1) * rows, :] = tap

    def step(i, x):
        a_t = alphas_ref[i, 0]
        a_p = alphas_ref[i, 1]
        # conv1 -- shared between both branches (t-emb additive after conv1).
        build_taps(x, taps1_ref, c_pad)
        h_base = jnp.dot(w1, taps1_ref[...],
                         preferred_element_type=jnp.float32) + b1
        hbo_ref[0:hid, :] = jnp.maximum(h_base + a_t * temb1, 0.0)
        hbo_ref[hid:2 * hid, :] = jnp.maximum(h_base + a_p * temb1, 0.0)
        # conv2 -- taps built once on the stacked (h_t ; h_prev) activation;
        # block-structured weight yields both branch outputs in one dot.
        build_taps(hbo_ref[...], taps2_ref, 2 * hid)
        r = jnp.dot(w2, taps2_ref[...], preferred_element_type=jnp.float32)
        u_t = r[0:c_pad, :] + b2 + a_t * temb2
        u_p = r[c_pad:2 * c_pad, :] + b2 + a_p * temb2
        x_tilde = (1.0 - a_t) * u_t + a_t * anchor
        x_tilde_prev = (1.0 - a_p) * u_p + a_p * anchor
        return x - x_tilde + x_tilde_prev

    x_final = jax.lax.fori_loop(0, timesteps, step, anchor)
    o_ref[...] = x_final[None].astype(o_ref.dtype)


def diffusion_forward_pallas(clean, noisy, alpha_fd, alphas, masks,
                             w1_2d, b1, temb1, w2_big, b2, temb2,
                             *, width, timesteps):
    """clean / noisy: (N, C_pad, H*W) f32.  Returns (N, C_pad, H*W) f32."""
    n, c_pad, hw = clean.shape
    hid = w1_2d.shape[0]

    img_spec = pl.BlockSpec((1, c_pad, hw), lambda i: (i, 0, 0))
    smem = pl.BlockSpec(memory_space=pltpu.MemorySpace.SMEM)

    def full(shape):
        return pl.BlockSpec(shape, lambda i: (0,) * len(shape))

    kern = functools.partial(_diffusion_forward_kernel,
                             width=width, timesteps=timesteps)
    return pl.pallas_call(
        kern,
        out_shape=jax.ShapeDtypeStruct((n, c_pad, hw), jnp.float32),
        grid=(n,),
        in_specs=[
            smem,                                     # alpha_fd  (1,)
            smem,                                     # alphas    (T, 2)
            img_spec,                                 # clean     (N, C_pad, HW)
            img_spec,                                 # noisy     (N, C_pad, HW)
            full((9, 1, hw)),                         # border masks
            full((hid, 9 * c_pad)),                   # w1 (folded K)
            full((hid, 1)),                           # b1
            full((hid, 1)),                           # temb1
            full((2 * c_pad, 9 * 2 * hid)),           # w2 block weight
            full((c_pad, 1)),                         # b2
            full((c_pad, 1)),                         # temb2
        ],
        out_specs=img_spec,
        scratch_shapes=[
            pltpu.VMEM((9 * c_pad, hw), jnp.float32),       # conv1 tap stack
            pltpu.VMEM((2 * hid, hw), jnp.float32),         # stacked h_t ; h_prev
            pltpu.VMEM((9 * 2 * hid, hw), jnp.float32),     # conv2 tap stack
        ],
        compiler_params=pltpu.CompilerParams(
            dimension_semantics=("parallel",)),
    )(alpha_fd, alphas, clean, noisy, masks, w1_2d, b1, temb1, w2_big, b2, temb2)


# --------------------------------------------------------------------------
# Host-side helpers: masks, weight packing
# --------------------------------------------------------------------------

def _round_up(x, m):
    return (x + m - 1) // m * m


def _make_tap_masks(h, w):
    """(9, 1, H*W) f32 destination-indexed border-validity masks.

    Tap order k = (dy+1)*3 + (dx+1), dy outer / dx inner over (-1, 0, 1) --
    must match the in-kernel `offs` order and the weight packing below.
    """
    ys, xs = np.divmod(np.arange(h * w), w)
    masks = np.zeros((9, 1, h * w), np.float32)
    k = 0
    for dy in (-1, 0, 1):
        for dx in (-1, 0, 1):
            valid = ((ys + dy >= 0) & (ys + dy < h) &
                     (xs + dx >= 0) & (xs + dx < w))
            masks[k, 0, :] = valid
            k += 1
    return jnp.asarray(masks)


def _pack_weights(unet, c_pad):
    """Repack TinyRDUNet weights for the transposed (C, HW) kernel layout.

      w1_2d[co, k*c_pad + ci]                = w1[k, ci, co]
      w2_big[co,       k*2*hid + ci]         = w2[k, ci, co]   (u_t block)
      w2_big[c_pad+co, k*2*hid + hid + ci]   = w2[k, ci, co]   (u_prev block)

    All other entries are zero, so padded channels contribute / receive zeros.
    """
    cin, hid = unet.in_ch, unet.hidden
    w1p = jnp.zeros((9, c_pad, hid), jnp.float32).at[:, :cin, :].set(unet.w1)
    w1_2d = jnp.transpose(w1p, (2, 0, 1)).reshape(hid, 9 * c_pad)

    w2p = jnp.zeros((9, hid, c_pad), jnp.float32).at[:, :, :cin].set(unet.w2)
    w2t = jnp.transpose(w2p, (0, 2, 1))                     # (9, c_pad, hid)
    zeros = jnp.zeros_like(w2t)
    top = jnp.concatenate([w2t, zeros], axis=2)             # u_t rows
    bot = jnp.concatenate([zeros, w2t], axis=2)             # u_prev rows
    w2_big = jnp.transpose(jnp.concatenate([top, bot], axis=1),
                           (1, 0, 2)).reshape(2 * c_pad, 9 * 2 * hid)

    b1 = unet.b1.reshape(hid, 1)
    temb1 = unet.temb1.reshape(hid, 1)
    b2 = jnp.zeros((c_pad, 1), jnp.float32).at[:cin, 0].set(unet.b2)
    temb2 = jnp.zeros((c_pad, 1), jnp.float32).at[:cin, 0].set(unet.temb2)
    return w1_2d, b1, temb1, w2_big, b2, temb2


# --------------------------------------------------------------------------
# Synthetic UNet stand-in (deterministic weights) + DiffusionModel
# --------------------------------------------------------------------------

class TinyRDUNet:
    """Synthetic stand-in for RDUNet: conv3x3 -> (+ t*emb) -> ReLU -> conv3x3.

    w[k] is the (ky=dy+1, kx=dx+1) tap of a standard (cross-correlation)
    zero-padded 'same' 3x3 convolution, k = (dy+1)*3 + (dx+1).
    """

    def __init__(self, key, in_ch=4, hidden=8):
        k1, k2, k3, k4, k5 = jax.random.split(key, 5)
        self.in_ch = in_ch
        self.hidden = hidden
        self.w1 = 0.1 * jax.random.normal(k1, (9, in_ch, hidden), jnp.float32)
        self.b1 = 0.05 * jax.random.normal(k2, (hidden,), jnp.float32)
        self.temb1 = 0.1 * jax.random.normal(k3, (hidden,), jnp.float32)
        self.w2 = 0.1 * jax.random.normal(k4, (9, hidden, in_ch), jnp.float32)
        self.b2 = jnp.zeros((in_ch,), jnp.float32)
        self.temb2 = 0.1 * jax.random.normal(k5, (in_ch,), jnp.float32)


class DiffusionModelPallas:
    """Pallas port of DiffusionModel (forward_diffusion + improved_sampling)."""

    def __init__(self, unet, timesteps=20):
        assert unet.hidden % 8 == 0, "hidden channels must be a multiple of 8"
        self.unet = unet
        self.timesteps = timesteps
        self.c_pad = _round_up(unet.in_ch, 8)
        (self.w1_2d, self.b1, self.temb1,
         self.w2_big, self.b2, self.temb2) = _pack_weights(unet, self.c_pad)
        steps = np.arange(timesteps, 0, -1, dtype=np.float32)   # t = T .. 1
        self.alphas = jnp.asarray(
            np.stack([steps / timesteps, (steps - 1.0) / timesteps], axis=1))
        self._forward_jit = jax.jit(self._forward)

    def _forward(self, clean_nchw, noisy_nchw, t):
        n, c, h, w = clean_nchw.shape
        # NCHW flattened spatially is already (N, C, HW): channels on
        # sublanes, pixels on lanes.  Zero-pad channels to a multiple of 8.
        clean = clean_nchw.reshape(n, c, h * w).astype(jnp.float32)
        noisy = noisy_nchw.reshape(n, c, h * w).astype(jnp.float32)
        pad = ((0, 0), (0, self.c_pad - c), (0, 0))
        clean = jnp.pad(clean, pad)
        noisy = jnp.pad(noisy, pad)

        alpha_fd = jnp.reshape(
            jnp.asarray(t, jnp.float32) / self.timesteps, (1,))
        masks = _make_tap_masks(h, w)

        out = diffusion_forward_pallas(
            clean, noisy, alpha_fd, self.alphas, masks,
            self.w1_2d, self.b1, self.temb1, self.w2_big, self.b2, self.temb2,
            width=w, timesteps=self.timesteps)
        return out[:, :c, :].reshape(n, c, h, w)

    def __call__(self, clean_nchw, noisy_nchw, t):
        return self._forward_jit(clean_nchw, noisy_nchw,
                                 jnp.asarray(t, jnp.float32))


# --------------------------------------------------------------------------
# Pure-JAX/XLA reference (independent: lax.conv, NCHW), for validation.
# --------------------------------------------------------------------------

def _reference_forward(clean, noisy, t, unet, timesteps):
    dn = ("NCHW", "OIHW", "NCHW")
    w1 = jnp.transpose(unet.w1.reshape(3, 3, unet.in_ch, unet.hidden),
                       (3, 2, 0, 1))
    w2 = jnp.transpose(unet.w2.reshape(3, 3, unet.hidden, unet.in_ch),
                       (3, 2, 0, 1))

    def conv(x, w):
        return jax.lax.conv_general_dilated(
            x, w, (1, 1), "SAME", dimension_numbers=dn,
            precision=jax.lax.Precision.HIGHEST)

    def unet_apply(x, alpha):
        h = conv(x, w1) + (unet.b1 + alpha * unet.temb1)[None, :, None, None]
        h = jnp.maximum(h, 0.0)
        return conv(h, w2) + (unet.b2 + alpha * unet.temb2)[None, :, None, None]

    alpha = t / timesteps
    anchor = alpha * noisy + (1.0 - alpha) * clean
    x = anchor
    for step in reversed(range(1, timesteps + 1)):
        a_t = step / timesteps
        a_p = (step - 1) / timesteps
        x_tilde = (1.0 - a_t) * unet_apply(x, a_t) + a_t * anchor
        x_tilde_prev = (1.0 - a_p) * unet_apply(x, a_p) + a_p * anchor
        x = x - x_tilde + x_tilde_prev
    return x


# --------------------------------------------------------------------------

if __name__ == "__main__":
    key = jax.random.PRNGKey(0)
    k_clean, k_noisy, k_unet = jax.random.split(key, 3)

    N, C, H, W = 2, 4, 16, 16          # PyTorch NCHW convention
    clean_image = jax.random.normal(k_clean, (N, C, H, W), jnp.float32)
    noisy_image = jax.random.normal(k_noisy, (N, C, H, W), jnp.float32)

    timesteps = 8                      # reference default is 20; small demo
    t = 3

    unet = TinyRDUNet(k_unet, in_ch=C, hidden=8)
    model = DiffusionModelPallas(unet, timesteps=timesteps)

    out = model(clean_image, noisy_image, t)
    out = jax.block_until_ready(out)

    assert out.shape == (N, C, H, W)
    assert out.dtype == jnp.float32
    assert bool(jnp.all(jnp.isfinite(out)))

    # Loose tolerance (allows MXU pass-precision differences); any structural
    # tap / roll / weight-packing bug would produce O(0.3+) errors.
    ref = _reference_forward(clean_image.astype(jnp.float32),
                             noisy_image.astype(jnp.float32),
                             float(t), unet, timesteps)
    max_err = float(jnp.max(jnp.abs(out - ref)))
    assert max_err < 5e-2, f"max |pallas - ref| = {max_err}"

    print("KERNEL_OK")
</pallas_src>

<mosaic_0001>
module attributes {stable_mosaic.version = 11 : i64} {
  func.func @_diffusion_forward_kernel(%arg0: i32, %arg1: memref<1xf32, #tpu.memory_space<smem>>, %arg2: memref<8x2xf32, #tpu.memory_space<smem>>, %arg3: memref<1x8x256xf32, #tpu.memory_space<vmem>>, %arg4: memref<1x8x256xf32, #tpu.memory_space<vmem>>, %arg5: memref<9x1x256xf32, #tpu.memory_space<vmem>>, %arg6: memref<8x72xf32, #tpu.memory_space<vmem>>, %arg7: memref<8x1xf32, #tpu.memory_space<vmem>>, %arg8: memref<8x1xf32, #tpu.memory_space<vmem>>, %arg9: memref<16x144xf32, #tpu.memory_space<vmem>>, %arg10: memref<8x1xf32, #tpu.memory_space<vmem>>, %arg11: memref<8x1xf32, #tpu.memory_space<vmem>>, %arg12: memref<1x8x256xf32, #tpu.memory_space<vmem>>, %arg13: memref<72x256xf32, #tpu.memory_space<vmem>>, %arg14: memref<16x256xf32, #tpu.memory_space<vmem>>, %arg15: memref<144x256xf32, #tpu.memory_space<vmem>>) attributes {dimension_semantics = [#tpu.dimension_semantics<parallel>], iteration_bounds = array<i64: 2>, scalar_prefetch = 0 : i64, scratch_operands = 3 : i64, tpu.core_type = #tpu.core_type<tc>, window_params = [{transform_indices = @transform_0, window_bounds = array<i64: 1>}, {transform_indices = @transform_1, window_bounds = array<i64: 8, 2>}, {transform_indices = @transform_2, window_bounds = array<i64: 1, 8, 256>}, {transform_indices = @transform_3, window_bounds = array<i64: 1, 8, 256>}, {pipeline_mode = #tpu.pipeline_mode<synchronous>, transform_indices = @transform_4, window_bounds = array<i64: 9, 1, 256>}, {pipeline_mode = #tpu.pipeline_mode<synchronous>, transform_indices = @transform_5, window_bounds = array<i64: 8, 72>}, {pipeline_mode = #tpu.pipeline_mode<synchronous>, transform_indices = @transform_6, window_bounds = array<i64: 8, 1>}, {pipeline_mode = #tpu.pipeline_mode<synchronous>, transform_indices = @transform_7, window_bounds = array<i64: 8, 1>}, {pipeline_mode = #tpu.pipeline_mode<synchronous>, transform_indices = @transform_8, window_bounds = array<i64: 16, 144>}, {pipeline_mode = #tpu.pipeline_mode<synchronous>, transform_indices = @transform_9, window_bounds = array<i64: 8, 1>}, {pipeline_mode = #tpu.pipeline_mode<synchronous>, transform_indices = @transform_10, window_bounds = array<i64: 8, 1>}, {transform_indices = @transform_11, window_bounds = array<i64: 1, 8, 256>}]} {
    %c0 = arith.constant 0 : index
    %0 = memref.load %arg1[%c0] : memref<1xf32, #tpu.memory_space<smem>>
    %c0_0 = arith.constant 0 : index
    %c0_1 = arith.constant 0 : index
    %c0_2 = arith.constant 0 : index
    %1 = vector.load %arg4[%c0_0, %c0_1, %c0_2] : memref<1x8x256xf32, #tpu.memory_space<vmem>>, vector<1x8x256xf32>
    %2 = vector.shape_cast %1 : vector<1x8x256xf32> to vector<8x256xf32>
    %3 = vector.broadcast %0 : f32 to vector<8x256xf32>
    %4 = arith.mulf %3, %2 : vector<8x256xf32>
    %cst = arith.constant 1.000000e+00 : f32
    %5 = arith.subf %cst, %0 : f32
    %c0_3 = arith.constant 0 : index
    %c0_4 = arith.constant 0 : index
    %c0_5 = arith.constant 0 : index
    %6 = vector.load %arg3[%c0_3, %c0_4, %c0_5] : memref<1x8x256xf32, #tpu.memory_space<vmem>>, vector<1x8x256xf32>
    %7 = vector.shape_cast %6 : vector<1x8x256xf32> to vector<8x256xf32>
    %8 = vector.broadcast %5 : f32 to vector<8x256xf32>
    %9 = arith.mulf %8, %7 : vector<8x256xf32>
    %10 = arith.addf %4, %9 : vector<8x256xf32>
    %c0_6 = arith.constant 0 : index
    %c0_7 = arith.constant 0 : index
    %11 = vector.load %arg6[%c0_6, %c0_7] : memref<8x72xf32, #tpu.memory_space<vmem>>, vector<8x72xf32>
    %c0_8 = arith.constant 0 : index
    %c0_9 = arith.constant 0 : index
    %12 = vector.load %arg9[%c0_8, %c0_9] : memref<16x144xf32, #tpu.memory_space<vmem>>, vector<16x144xf32>
    %c0_10 = arith.constant 0 : index
    %c0_11 = arith.constant 0 : index
    %13 = vector.load %arg7[%c0_10, %c0_11] : memref<8x1xf32, #tpu.memory_space<vmem>>, vector<8x1xf32>
    %14 = vector.shape_cast %13 : vector<8x1xf32> to vector<8x1xf32>
    %15 = vector.broadcast %14 : vector<8x1xf32> to vector<8x256xf32>
    %c0_12 = arith.constant 0 : index
    %c0_13 = arith.constant 0 : index
    %16 = vector.load %arg8[%c0_12, %c0_13] : memref<8x1xf32, #tpu.memory_space<vmem>>, vector<8x1xf32>
    %17 = vector.shape_cast %16 : vector<8x1xf32> to vector<8x1xf32>
    %18 = vector.broadcast %17 : vector<8x1xf32> to vector<8x256xf32>
    %c0_14 = arith.constant 0 : index
    %c0_15 = arith.constant 0 : index
    %19 = vector.load %arg10[%c0_14, %c0_15] : memref<8x1xf32, #tpu.memory_space<vmem>>, vector<8x1xf32>
    %20 = vector.shape_cast %19 : vector<8x1xf32> to vector<8x1xf32>
    %21 = vector.broadcast %20 : vector<8x1xf32> to vector<8x256xf32>
    %c0_16 = arith.constant 0 : index
    %c0_17 = arith.constant 0 : index
    %22 = vector.load %arg11[%c0_16, %c0_17] : memref<8x1xf32, #tpu.memory_space<vmem>>, vector<8x1xf32>
    %23 = vector.shape_cast %22 : vector<8x1xf32> to vector<8x1xf32>
    %24 = vector.broadcast %23 : vector<8x1xf32> to vector<8x256xf32>
    %c0_18 = arith.constant 0 : index
    %c0_19 = arith.constant 0 : index
    %c0_20 = arith.constant 0 : index
    %25 = vector.load %arg5[%c0_18, %c0_19, %c0_20] : memref<9x1x256xf32, #tpu.memory_space<vmem>>, vector<1x1x256xf32>
    %26 = vector.shape_cast %25 : vector<1x1x256xf32> to vector<1x256xf32>
    %c1 = arith.constant 1 : index
    %c0_21 = arith.constant 0 : index
    %c0_22 = arith.constant 0 : index
    %27 = vector.load %arg5[%c1, %c0_21, %c0_22] : memref<9x1x256xf32, #tpu.memory_space<vmem>>, vector<1x1x256xf32>
    %28 = vector.shape_cast %27 : vector<1x1x256xf32> to vector<1x256xf32>
    %c2 = arith.constant 2 : index
    %c0_23 = arith.constant 0 : index
    %c0_24 = arith.constant 0 : index
    %29 = vector.load %arg5[%c2, %c0_23, %c0_24] : memref<9x1x256xf32, #tpu.memory_space<vmem>>, vector<1x1x256xf32>
    %30 = vector.shape_cast %29 : vector<1x1x256xf32> to vector<1x256xf32>
    %c3 = arith.constant 3 : index
    %c0_25 = arith.constant 0 : index
    %c0_26 = arith.constant 0 : index
    %31 = vector.load %arg5[%c3, %c0_25, %c0_26] : memref<9x1x256xf32, #tpu.memory_space<vmem>>, vector<1x1x256xf32>
    %32 = vector.shape_cast %31 : vector<1x1x256xf32> to vector<1x256xf32>
    %c5 = arith.constant 5 : index
    %c0_27 = arith.constant 0 : index
    %c0_28 = arith.constant 0 : index
    %33 = vector.load %arg5[%c5, %c0_27, %c0_28] : memref<9x1x256xf32, #tpu.memory_space<vmem>>, vector<1x1x256xf32>
    %34 = vector.shape_cast %33 : vector<1x1x256xf32> to vector<1x256xf32>
    %c6 = arith.constant 6 : index
    %c0_29 = arith.constant 0 : index
    %c0_30 = arith.constant 0 : index
    %35 = vector.load %arg5[%c6, %c0_29, %c0_30] : memref<9x1x256xf32, #tpu.memory_space<vmem>>, vector<1x1x256xf32>
    %36 = vector.shape_cast %35 : vector<1x1x256xf32> to vector<1x256xf32>
    %c7 = arith.constant 7 : index
    %c0_31 = arith.constant 0 : index
    %c0_32 = arith.constant 0 : index
    %37 = vector.load %arg5[%c7, %c0_31, %c0_32] : memref<9x1x256xf32, #tpu.memory_space<vmem>>, vector<1x1x256xf32>
    %38 = vector.shape_cast %37 : vector<1x1x256xf32> to vector<1x256xf32>
    %c8 = arith.constant 8 : index
    %c0_33 = arith.constant 0 : index
    %c0_34 = arith.constant 0 : index
    %39 = vector.load %arg5[%c8, %c0_33, %c0_34] : memref<9x1x256xf32, #tpu.memory_space<vmem>>, vector<1x1x256xf32>
    %40 = vector.shape_cast %39 : vector<1x1x256xf32> to vector<1x256xf32>
    %c0_i32 = arith.constant 0 : i32
    %c8_i32 = arith.constant 8 : i32
    %41 = arith.addi %c0_i32, %c8_i32 : i32
    %c1_i32 = arith.constant 1 : i32
    %42 = scf.for %arg16 = %c0_i32 to %41 step %c1_i32 iter_args(%arg17 = %10) -> (vector<8x256xf32>)  : i32 {
      %45 = arith.index_cast %arg16 : i32 to index
      %c0_39 = arith.constant 0 : index
      %46 = memref.load %arg2[%45, %c0_39] : memref<8x2xf32, #tpu.memory_space<smem>>
      %47 = arith.index_cast %arg16 : i32 to index
      %c1_40 = arith.constant 1 : index
      %48 = memref.load %arg2[%47, %c1_40] : memref<8x2xf32, #tpu.memory_space<smem>>
      %c17_i32 = arith.constant 17 : i32
      %49 = tpu.dynamic_rotate %arg17 by %c17_i32 dim 1 : vector<8x256xf32>, i32 -> vector<8x256xf32>
      %50 = vector.broadcast %26 : vector<1x256xf32> to vector<8x256xf32>
      %51 = arith.mulf %49, %50 : vector<8x256xf32>
      %c0_41 = arith.constant 0 : index
      %c0_42 = arith.constant 0 : index
      %52 = vector.load %arg13[%c0_41, %c0_42] : memref<72x256xf32, #tpu.memory_space<vmem>>, vector<8x256xf32>
      tpu.vector_store %arg13[%c0_41, %c0_42], %51 {strides = array<i32>} : memref<72x256xf32, #tpu.memory_space<vmem>>, vector<8x256xf32>,
      %c16_i32 = arith.constant 16 : i32
      %53 = tpu.dynamic_rotate %arg17 by %c16_i32 dim 1 : vector<8x256xf32>, i32 -> vector<8x256xf32>
      %54 = vector.broadcast %28 : vector<1x256xf32> to vector<8x256xf32>
      %55 = arith.mulf %53, %54 : vector<8x256xf32>
      %c8_43 = arith.constant 8 : index
      %c0_44 = arith.constant 0 : index
      %56 = vector.load %arg13[%c8_43, %c0_44] : memref<72x256xf32, #tpu.memory_space<vmem>>, vector<8x256xf32>
      tpu.vector_store %arg13[%c8_43, %c0_44], %55 {strides = array<i32>} : memref<72x256xf32, #tpu.memory_space<vmem>>, vector<8x256xf32>,
      %c15_i32 = arith.constant 15 : i32
      %57 = tpu.dynamic_rotate %arg17 by %c15_i32 dim 1 : vector<8x256xf32>, i32 -> vector<8x256xf32>
      %58 = vector.broadcast %30 : vector<1x256xf32> to vector<8x256xf32>
      %59 = arith.mulf %57, %58 : vector<8x256xf32>
      %c16 = arith.constant 16 : index
      %c0_45 = arith.constant 0 : index
      %60 = vector.load %arg13[%c16, %c0_45] : memref<72x256xf32, #tpu.memory_space<vmem>>, vector<8x256xf32>
      tpu.vector_store %arg13[%c16, %c0_45], %59 {strides = array<i32>} : memref<72x256xf32, #tpu.memory_space<vmem>>, vector<8x256xf32>,
      %c1_i32_46 = arith.constant 1 : i32
      %61 = tpu.dynamic_rotate %arg17 by %c1_i32_46 dim 1 : vector<8x256xf32>, i32 -> vector<8x256xf32>
      %62 = vector.broadcast %32 : vector<1x256xf32> to vector<8x256xf32>
      %63 = arith.mulf %61, %62 : vector<8x256xf32>
      %c24 = arith.constant 24 : index
      %c0_47 = arith.constant 0 : index
      %64 = vector.load %arg13[%c24, %c0_47] : memref<72x256xf32, #tpu.memory_space<vmem>>, vector<8x256xf32>
      tpu.vector_store %arg13[%c24, %c0_47], %63 {strides = array<i32>} : memref<72x256xf32, #tpu.memory_space<vmem>>, vector<8x256xf32>,
      %c32 = arith.constant 32 : index
      %c0_48 = arith.constant 0 : index
      %65 = vector.load %arg13[%c32, %c0_48] : memref<72x256xf32, #tpu.memory_space<vmem>>, vector<8x256xf32>
      tpu.vector_store %arg13[%c32, %c0_48], %arg17 {strides = array<i32>} : memref<72x256xf32, #tpu.memory_space<vmem>>, vector<8x256xf32>,
      %c255_i32 = arith.constant 255 : i32
      %66 = tpu.dynamic_rotate %arg17 by %c255_i32 dim 1 : vector<8x256xf32>, i32 -> vector<8x256xf32>
      %67 = vector.broadcast %34 : vector<1x256xf32> to vector<8x256xf32>
      %68 = arith.mulf %66, %67 : vector<8x256xf32>
      %c40 = arith.constant 40 : index
      %c0_49 = arith.constant 0 : index
      %69 = vector.load %arg13[%c40, %c0_49] : memref<72x256xf32, #tpu.memory_space<vmem>>, vector<8x256xf32>
      tpu.vector_store %arg13[%c40, %c0_49], %68 {strides = array<i32>} : memref<72x256xf32, #tpu.memory_space<vmem>>, vector<8x256xf32>,
      %c241_i32 = arith.constant 241 : i32
      %70 = tpu.dynamic_rotate %arg17 by %c241_i32 dim 1 : vector<8x256xf32>, i32 -> vector<8x256xf32>
      %71 = vector.broadcast %36 : vector<1x256xf32> to vector<8x256xf32>
      %72 = arith.mulf %70, %71 : vector<8x256xf32>
      %c48 = arith.constant 48 : index
      %c0_50 = arith.constant 0 : index
      %73 = vector.load %arg13[%c48, %c0_50] : memref<72x256xf32, #tpu.memory_space<vmem>>, vector<8x256xf32>
      tpu.vector_store %arg13[%c48, %c0_50], %72 {strides = array<i32>} : memref<72x256xf32, #tpu.memory_space<vmem>>, vector<8x256xf32>,
      %c240_i32 = arith.constant 240 : i32
      %74 = tpu.dynamic_rotate %arg17 by %c240_i32 dim 1 : vector<8x256xf32>, i32 -> vector<8x256xf32>
      %75 = vector.broadcast %38 : vector<1x256xf32> to vector<8x256xf32>
      %76 = arith.mulf %74, %75 : vector<8x256xf32>
      %c56 = arith.constant 56 : index
      %c0_51 = arith.constant 0 : index
      %77 = vector.load %arg13[%c56, %c0_51] : memref<72x256xf32, #tpu.memory_space<vmem>>, vector<8x256xf32>
      tpu.vector_store %arg13[%c56, %c0_51], %76 {strides = array<i32>} : memref<72x256xf32, #tpu.memory_space<vmem>>, vector<8x256xf32>,
      %c239_i32 = arith.constant 239 : i32
      %78 = tpu.dynamic_rotate %arg17 by %c239_i32 dim 1 : vector<8x256xf32>, i32 -> vector<8x256xf32>
      %79 = vector.broadcast %40 : vector<1x256xf32> to vector<8x256xf32>
      %80 = arith.mulf %78, %79 : vector<8x256xf32>
      %c64 = arith.constant 64 : index
      %c0_52 = arith.constant 0 : index
      %81 = vector.load %arg13[%c64, %c0_52] : memref<72x256xf32, #tpu.memory_space<vmem>>, vector<8x256xf32>
      tpu.vector_store %arg13[%c64, %c0_52], %80 {strides = array<i32>} : memref<72x256xf32, #tpu.memory_space<vmem>>, vector<8x256xf32>,
      %c0_53 = arith.constant 0 : index
      %c0_54 = arith.constant 0 : index
      %82 = vector.load %arg13[%c0_53, %c0_54] : memref<72x256xf32, #tpu.memory_space<vmem>>, vector<72x256xf32>
      %cst_55 = arith.constant dense<0.000000e+00> : vector<8x256xf32>
      %83 = tpu.matmul %11, %82, %cst_55 {dimension_numbers = #tpu.dot_dimension_numbers<[1], [0], [0], [1], [0, 0, 1, 1], [], []>} : vector<8x72xf32>, vector<72x256xf32>, vector<8x256xf32> -> vector<8x256xf32>
      %84 = arith.addf %83, %15 : vector<8x256xf32>
      %85 = vector.broadcast %46 : f32 to vector<8x256xf32>
      %86 = arith.mulf %85, %18 : vector<8x256xf32>
      %87 = arith.addf %84, %86 : vector<8x256xf32>
      %cst_56 = arith.constant 0.000000e+00 : f32
      %88 = vector.broadcast %cst_56 : f32 to vector<8x256xf32>
      %89 = arith.maximumf %87, %88 : vector<8x256xf32>
      %c0_57 = arith.constant 0 : index
      %c0_58 = arith.constant 0 : index
      %90 = vector.load %arg14[%c0_57, %c0_58] : memref<16x256xf32, #tpu.memory_space<vmem>>, vector<8x256xf32>
      tpu.vector_store %arg14[%c0_57, %c0_58], %89 {strides = array<i32>} : memref<16x256xf32, #tpu.memory_space<vmem>>, vector<8x256xf32>,
      %91 = vector.broadcast %48 : f32 to vector<8x256xf32>
      %92 = arith.mulf %91, %18 : vector<8x256xf32>
      %93 = arith.addf %84, %92 : vector<8x256xf32>
      %cst_59 = arith.constant 0.000000e+00 : f32
      %94 = vector.broadcast %cst_59 : f32 to vector<8x256xf32>
      %95 = arith.maximumf %93, %94 : vector<8x256xf32>
      %c8_60 = arith.constant 8 : index
      %c0_61 = arith.constant 0 : index
      %96 = vector.load %arg14[%c8_60, %c0_61] : memref<16x256xf32, #tpu.memory_space<vmem>>, vector<8x256xf32>
      tpu.vector_store %arg14[%c8_60, %c0_61], %95 {strides = array<i32>} : memref<16x256xf32, #tpu.memory_space<vmem>>, vector<8x256xf32>,
      %c0_62 = arith.constant 0 : index
      %c0_63 = arith.constant 0 : index
      %97 = vector.load %arg14[%c0_62, %c0_63] : memref<16x256xf32, #tpu.memory_space<vmem>>, vector<16x256xf32>
      %c17_i32_64 = arith.constant 17 : i32
      %98 = tpu.dynamic_rotate %97 by %c17_i32_64 dim 1 : vector<16x256xf32>, i32 -> vector<16x256xf32>
      %99 = vector.broadcast %26 : vector<1x256xf32> to vector<16x256xf32>
      %100 = arith.mulf %98, %99 : vector<16x256xf32>
      %c0_65 = arith.constant 0 : index
      %c0_66 = arith.constant 0 : index
      %101 = vector.load %arg15[%c0_65, %c0_66] : memref<144x256xf32, #tpu.memory_space<vmem>>, vector<16x256xf32>
      tpu.vector_store %arg15[%c0_65, %c0_66], %100 {strides = array<i32>} : memref<144x256xf32, #tpu.memory_space<vmem>>, vector<16x256xf32>,
      %c16_i32_67 = arith.constant 16 : i32
      %102 = tpu.dynamic_rotate %97 by %c16_i32_67 dim 1 : vector<16x256xf32>, i32 -> vector<16x256xf32>
      %103 = vector.broadcast %28 : vector<1x256xf32> to vector<16x256xf32>
      %104 = arith.mulf %102, %103 : vector<16x256xf32>
      %c16_68 = arith.constant 16 : index
      %c0_69 = arith.constant 0 : index
      %105 = vector.load %arg15[%c16_68, %c0_69] : memref<144x256xf32, #tpu.memory_space<vmem>>, vector<16x256xf32>
      tpu.vector_store %arg15[%c16_68, %c0_69], %104 {strides = array<i32>} : memref<144x256xf32, #tpu.memory_space<vmem>>, vector<16x256xf32>,
      %c15_i32_70 = arith.constant 15 : i32
      %106 = tpu.dynamic_rotate %97 by %c15_i32_70 dim 1 : vector<16x256xf32>, i32 -> vector<16x256xf32>
      %107 = vector.broadcast %30 : vector<1x256xf32> to vector<16x256xf32>
      %108 = arith.mulf %106, %107 : vector<16x256xf32>
      %c32_71 = arith.constant 32 : index
      %c0_72 = arith.constant 0 : index
      %109 = vector.load %arg15[%c32_71, %c0_72] : memref<144x256xf32, #tpu.memory_space<vmem>>, vector<16x256xf32>
      tpu.vector_store %arg15[%c32_71, %c0_72], %108 {strides = array<i32>} : memref<144x256xf32, #tpu.memory_space<vmem>>, vector<16x256xf32>,
      %c1_i32_73 = arith.constant 1 : i32
      %110 = tpu.dynamic_rotate %97 by %c1_i32_73 dim 1 : vector<16x256xf32>, i32 -> vector<16x256xf32>
      %111 = vector.broadcast %32 : vector<1x256xf32> to vector<16x256xf32>
      %112 = arith.mulf %110, %111 : vector<16x256xf32>
      %c48_74 = arith.constant 48 : index
      %c0_75 = arith.constant 0 : index
      %113 = vector.load %arg15[%c48_74, %c0_75] : memref<144x256xf32, #tpu.memory_space<vmem>>, vector<16x256xf32>
      tpu.vector_store %arg15[%c48_74, %c0_75], %112 {strides = array<i32>} : memref<144x256xf32, #tpu.memory_space<vmem>>, vector<16x256xf32>,
      %c64_76 = arith.constant 64 : index
      %c0_77 = arith.constant 0 : index
      %114 = vector.load %arg15[%c64_76, %c0_77] : memref<144x256xf32, #tpu.memory_space<vmem>>, vector<16x256xf32>
      tpu.vector_store %arg15[%c64_76, %c0_77], %97 {strides = array<i32>} : memref<144x256xf32, #tpu.memory_space<vmem>>, vector<16x256xf32>,
      %c255_i32_78 = arith.constant 255 : i32
      %115 = tpu.dynamic_rotate %97 by %c255_i32_78 dim 1 : vector<16x256xf32>, i32 -> vector<16x256xf32>
      %116 = vector.broadcast %34 : vector<1x256xf32> to vector<16x256xf32>
      %117 = arith.mulf %115, %116 : vector<16x256xf32>
      %c80 = arith.constant 80 : index
      %c0_79 = arith.constant 0 : index
      %118 = vector.load %arg15[%c80, %c0_79] : memref<144x256xf32, #tpu.memory_space<vmem>>, vector<16x256xf32>
      tpu.vector_store %arg15[%c80, %c0_79], %117 {strides = array<i32>} : memref<144x256xf32, #tpu.memory_space<vmem>>, vector<16x256xf32>,
      %c241_i32_80 = arith.constant 241 : i32
      %119 = tpu.dynamic_rotate %97 by %c241_i32_80 dim 1 : vector<16x256xf32>, i32 -> vector<16x256xf32>
      %120 = vector.broadcast %36 : vector<1x256xf32> to vector<16x256xf32>
      %121 = arith.mulf %119, %120 : vector<16x256xf32>
      %c96 = arith.constant 96 : index
      %c0_81 = arith.constant 0 : index
      %122 = vector.load %arg15[%c96, %c0_81] : memref<144x256xf32, #tpu.memory_space<vmem>>, vector<16x256xf32>
      tpu.vector_store %arg15[%c96, %c0_81], %121 {strides = array<i32>} : memref<144x256xf32, #tpu.memory_space<vmem>>, vector<16x256xf32>,
      %c240_i32_82 = arith.constant 240 : i32
      %123 = tpu.dynamic_rotate %97 by %c240_i32_82 dim 1 : vector<16x256xf32>, i32 -> vector<16x256xf32>
      %124 = vector.broadcast %38 : vector<1x256xf32> to vector<16x256xf32>
      %125 = arith.mulf %123, %124 : vector<16x256xf32>
      %c112 = arith.constant 112 : index
      %c0_83 = arith.constant 0 : index
      %126 = vector.load %arg15[%c112, %c0_83] : memref<144x256xf32, #tpu.memory_space<vmem>>, vector<16x256xf32>
      tpu.vector_store %arg15[%c112, %c0_83], %125 {strides = array<i32>} : memref<144x256xf32, #tpu.memory_space<vmem>>, vector<16x256xf32>,
      %c239_i32_84 = arith.constant 239 : i32
      %127 = tpu.dynamic_rotate %97 by %c239_i32_84 dim 1 : vector<16x256xf32>, i32 -> vector<16x256xf32>
      %128 = vector.broadcast %40 : vector<1x256xf32> to vector<16x256xf32>
      %129 = arith.mulf %127, %128 : vector<16x256xf32>
      %c128 = arith.constant 128 : index
      %c0_85 = arith.constant 0 : index
      %130 = vector.load %arg15[%c128, %c0_85] : memref<144x256xf32, #tpu.memory_space<vmem>>, vector<16x256xf32>
      tpu.vector_store %arg15[%c128, %c0_85], %129 {strides = array<i32>} : memref<144x256xf32, #tpu.memory_space<vmem>>, vector<16x256xf32>,
      %c0_86 = arith.constant 0 : index
      %c0_87 = arith.constant 0 : index
      %131 = vector.load %arg15[%c0_86, %c0_87] : memref<144x256xf32, #tpu.memory_space<vmem>>, vector<144x256xf32>
      %cst_88 = arith.constant dense<0.000000e+00> : vector<16x256xf32>
      %132 = tpu.matmul %12, %131, %cst_88 {dimension_numbers = #tpu.dot_dimension_numbers<[1], [0], [0], [1], [0, 0, 1, 1], [], []>} : vector<16x144xf32>, vector<144x256xf32>, vector<16x256xf32> -> vector<16x256xf32>
      %133 = vector.extract_strided_slice %132 {offsets = [0, 0], sizes = [8, 256], strides = [1, 1]} : vector<16x256xf32> to vector<8x256xf32>
      %134 = arith.addf %133, %21 : vector<8x256xf32>
      %135 = vector.broadcast %46 : f32 to vector<8x256xf32>
      %136 = arith.mulf %135, %24 : vector<8x256xf32>
      %137 = arith.addf %134, %136 : vector<8x256xf32>
      %138 = vector.extract_strided_slice %132 {offsets = [8, 0], sizes = [8, 256], strides = [1, 1]} : vector<16x256xf32> to vector<8x256xf32>
      %139 = arith.addf %138, %21 : vector<8x256xf32>
      %140 = vector.broadcast %48 : f32 to vector<8x256xf32>
      %141 = arith.mulf %140, %24 : vector<8x256xf32>
      %142 = arith.addf %139, %141 : vector<8x256xf32>
      %cst_89 = arith.constant 1.000000e+00 : f32
      %143 = arith.subf %cst_89, %46 : f32
      %144 = vector.broadcast %143 : f32 to vector<8x256xf32>
      %145 = arith.mulf %144, %137 : vector<8x256xf32>
      %146 = vector.broadcast %46 : f32 to vector<8x256xf32>
      %147 = arith.mulf %146, %10 : vector<8x256xf32>
      %148 = arith.addf %145, %147 : vector<8x256xf32>
      %cst_90 = arith.constant 1.000000e+00 : f32
      %149 = arith.subf %cst_90, %48 : f32
      %150 = vector.broadcast %149 : f32 to vector<8x256xf32>
      %151 = arith.mulf %150, %142 : vector<8x256xf32>
      %152 = vector.broadcast %48 : f32 to vector<8x256xf32>
      %153 = arith.mulf %152, %10 : vector<8x256xf32>
      %154 = arith.addf %151, %153 : vector<8x256xf32>
      %155 = arith.subf %arg17, %148 : vector<8x256xf32>
      %156 = arith.addf %155, %154 : vector<8x256xf32>
      scf.yield %156 : vector<8x256xf32>
    }
    %c8_i32_35 = arith.constant 8 : i32
    %43 = vector.shape_cast %42 : vector<8x256xf32> to vector<1x8x256xf32>
    %c0_36 = arith.constant 0 : index
    %c0_37 = arith.constant 0 : index
    %c0_38 = arith.constant 0 : index
    %44 = vector.load %arg12[%c0_36, %c0_37, %c0_38] : memref<1x8x256xf32, #tpu.memory_space<vmem>>, vector<1x8x256xf32>
    tpu.vector_store %arg12[%c0_36, %c0_37, %c0_38], %43 {strides = array<i32>} : memref<1x8x256xf32, #tpu.memory_space<vmem>>, vector<1x8x256xf32>,
    return
  }
  func.func @transform_0(%arg0: i32) -> i32 {
    %c0_i32 = arith.constant 0 : i32
    %c0_i32_0 = arith.constant 0 : i32
    return %c0_i32 : i32
  }
  func.func @transform_1(%arg0: i32) -> (i32, i32) {
    %c0_i32 = arith.constant 0 : i32
    %c0_i32_0 = arith.constant 0 : i32
    %c0_i32_1 = arith.constant 0 : i32
    return %c0_i32, %c0_i32_0 : i32, i32
  }
  func.func @transform_2(%arg0: i32) -> (i32, i32, i32) {
    %c0_i32 = arith.constant 0 : i32
    %c0_i32_0 = arith.constant 0 : i32
    %c0_i32_1 = arith.constant 0 : i32
    return %arg0, %c0_i32, %c0_i32_0 : i32, i32, i32
  }
  func.func @transform_3(%arg0: i32) -> (i32, i32, i32) {
    %c0_i32 = arith.constant 0 : i32
    %c0_i32_0 = arith.constant 0 : i32
    %c0_i32_1 = arith.constant 0 : i32
    return %arg0, %c0_i32, %c0_i32_0 : i32, i32, i32
  }
  func.func @transform_4(%arg0: i32) -> (i32, i32, i32) {
    %c0_i32 = arith.constant 0 : i32
    %c0_i32_0 = arith.constant 0 : i32
    %c0_i32_1 = arith.constant 0 : i32
    %c0_i32_2 = arith.constant 0 : i32
    return %c0_i32, %c0_i32_0, %c0_i32_1 : i32, i32, i32
  }
  func.func @transform_5(%arg0: i32) -> (i32, i32) {
    %c0_i32 = arith.constant 0 : i32
    %c0_i32_0 = arith.constant 0 : i32
    %c0_i32_1 = arith.constant 0 : i32
    return %c0_i32, %c0_i32_0 : i32, i32
  }
  func.func @transform_6(%arg0: i32) -> (i32, i32) {
    %c0_i32 = arith.constant 0 : i32
    %c0_i32_0 = arith.constant 0 : i32
    %c0_i32_1 = arith.constant 0 : i32
    return %c0_i32, %c0_i32_0 : i32, i32
  }
  func.func @transform_7(%arg0: i32) -> (i32, i32) {
    %c0_i32 = arith.constant 0 : i32
    %c0_i32_0 = arith.constant 0 : i32
    %c0_i32_1 = arith.constant 0 : i32
    return %c0_i32, %c0_i32_0 : i32, i32
  }
  func.func @transform_8(%arg0: i32) -> (i32, i32) {
    %c0_i32 = arith.constant 0 : i32
    %c0_i32_0 = arith.constant 0 : i32
    %c0_i32_1 = arith.constant 0 : i32
    return %c0_i32, %c0_i32_0 : i32, i32
  }
  func.func @transform_9(%arg0: i32) -> (i32, i32) {
    %c0_i32 = arith.constant 0 : i32
    %c0_i32_0 = arith.constant 0 : i32
    %c0_i32_1 = arith.constant 0 : i32
    return %c0_i32, %c0_i32_0 : i32, i32
  }
  func.func @transform_10(%arg0: i32) -> (i32, i32) {
    %c0_i32 = arith.constant 0 : i32
    %c0_i32_0 = arith.constant 0 : i32
    %c0_i32_1 = arith.constant 0 : i32
    return %c0_i32, %c0_i32_0 : i32, i32
  }
  func.func @transform_11(%arg0: i32) -> (i32, i32, i32) {
    %c0_i32 = arith.constant 0 : i32
    %c0_i32_0 = arith.constant 0 : i32
    %c0_i32_1 = arith.constant 0 : i32
    return %arg0, %c0_i32, %c0_i32_0 : i32, i32, i32
  }
}

</mosaic_0001>

<llo_original>
// kernel: _forward.1
$region0: #{_forward.1}
  #allocation0 [shape = 'u32[]', space=smem, size = 0x4, offset = 0x4, fixed_abs, tag = 'smem constant byte address 0x4 - core index']
  #allocation1 [shape = 'u32[144,128]{1,0:T(1,128)}', space=vmem, size = 0x12000, scoped, tag = 'internal scratch']
  #allocation2 [shape = 'f32[72,256]{1,0:T(8,128)}', space=vmem, size = 0x12000, scoped, tag = 'scratch operand']
  #allocation3 [shape = 'f32[16,256]{1,0:T(8,128)}', space=vmem, size = 0x4000, scoped, tag = 'scratch operand']
  #allocation4 [shape = 'f32[144,256]{1,0:T(8,128)}', space=vmem, size = 0x24000, scoped, tag = 'scratch operand']
  #allocation5 [shape = 'f32[1]{0:T(128)S(6)}', space=smem, size = 0x200, scoped, tag = 'scoped memory for _forward.1']
  %s0 = inlined_call_operand.<no memory space> [shape: f32[1], index: 0, kind: input, shape index: {}]
  %s1 = inlined_call_operand.vmem [shape: f32[8,2], index: 1, kind: input, shape index: {}]
  %s2 = inlined_call_operand.vmem [shape: f32[2,8,256], index: 2, kind: input, shape index: {}]
  %s3 = inlined_call_operand.vmem [shape: f32[2,8,256], index: 3, kind: input, shape index: {}]
  %s4 = inlined_call_operand.vmem [shape: f32[9,1,256], index: 4, kind: input, shape index: {}]
  %s5 = inlined_call_operand.vmem [shape: f32[8,72], index: 5, kind: input, shape index: {}]
  %s6 = inlined_call_operand.vmem [shape: f32[8,1], index: 6, kind: input, shape index: {}]
  %s7 = inlined_call_operand.vmem [shape: f32[8,1], index: 7, kind: input, shape index: {}]
  %s8 = inlined_call_operand.vmem [shape: f32[16,144], index: 8, kind: input, shape index: {}]
  %s9 = inlined_call_operand.vmem [shape: f32[8,1], index: 9, kind: input, shape index: {}]
  %s10 = inlined_call_operand.vmem [shape: f32[8,1], index: 10, kind: input, shape index: {}]
  %s11 = inlined_call_operand.vmem [shape: f32[2,8,256], index: 11, kind: output, shape index: {}]
  %s12 = sld [smem:[#allocation0]]
  $region88: #{_forward.1} parent=0
    _
  %s14 = ssub.s32 1, %s12
  %s15 = scalar_select 0, %s14, %s12
  %16 = sst [smem:[#allocation5]] %s0
  $region1: #{_forward.1} parent=0
    #allocation6 [shape = 'u8[4096]{0}', space=smem, size = 0x1000, scoped, tag = 'input window, operand 1, single buffered']
    #allocation7 [shape = 's32[2]{0}', space=sflag, size = 0x8, scoped, tag = 'scoped memory for _forward.1']
    %17 = vsyncpa [#allocation7], 0
    loop: start=0, step=1, limit=4
    $region2: #{_forward.1} parent=1 // loop_pre_header
      _
    $region3: #{_forward.1} parent=1 // loop_header
      %s19 = sphi 0, %s23
      %p20 = scmp.ge.s32.totalorder %s19, 4
      %s27 = sphi 0, %s27
      %s29 = sphi 0, %s27
      %s30 = sphi 0, %s29
      %s44 = sphi 0, %s30
      %s48 = sphi 0, %s48
      %s50 = sphi 0, %s48
      %s51 = sphi 0, %s50
      %s65 = sphi 0, %s51
      %s71 = sphi 0, %s73
      %s74 = sphi 0, %s71
      %s75 = sphi 0, %s74
      %s91 = sphi 0, %s75
      %s97 = sphi 0, %s99
      %s100 = sphi 0, %s97
      %s101 = sphi 0, %s100
      %s117 = sphi 0, %s101
      %s121 = sphi 0, %s121
      %s123 = sphi 0, %s121
      %s124 = sphi 0, %s123
      %s138 = sphi 0, %s124
      %s142 = sphi 0, %s142
      %s144 = sphi 0, %s142
      %s145 = sphi 0, %s144
      %s159 = sphi 0, %s145
      %s163 = sphi 0, %s163
      %s165 = sphi 0, %s163
      %s166 = sphi 0, %s165
      %s180 = sphi 0, %s166
      %s184 = sphi 0, %s184
      %s186 = sphi 0, %s184
      %s187 = sphi 0, %s186
      %s201 = sphi 0, %s187
      %s205 = sphi 0, %s205
      %s207 = sphi 0, %s205
      %s208 = sphi 0, %s207
      %s222 = sphi 0, %s208
      %s226 = sphi 0, %s226
      %s228 = sphi 0, %s226
      %s229 = sphi 0, %s228
      %s243 = sphi 0, %s229
      %s247 = sphi 0, %s247
      %s249 = sphi 0, %s247
      %s250 = sphi 0, %s249
      %s264 = sphi 0, %s250
      %s270 = sphi 0, %s272
      %s273 = sphi 0, %s270
      %s274 = sphi 0, %s273
      %s290 = sphi 0, %s274
    $region4: #{_forward.1} parent=1 // loop_header_branch
      %22 = sbr.rel (%p20) target = $region8
    $region5: #{_forward.1} parent=1 // loop_body
      %s24 = ssub.s32 %s19, 1
      %s25 = ssub.s32 %s19, 2
      %s26 = sadd.s32 %s19, 1
      %s28 = sadd.s32 %s27, 1
      %p31 = scmp.eq.s32.totalorder %s19, 1
      %p32 = scmp.ne.s32.totalorder %s27, %s29
      %p33 = scmp.eq.s32.totalorder %s19, 0
      %p34 = por %p32, %p33
      %p35 = scmp.ne.s32.totalorder %s27, %s29
      %p36 = scmp.eq.s32.totalorder %s24, 1
      %p37 = por %p35, %p36
      %p38 = scmp.ne.s32.totalorder %s29, %s30
      %p39 = scmp.eq.s32.totalorder %s24, 0
      %p40 = por %p38, %p39
      %p41 = scmp.ne.s32.totalorder %s29, %s30
      %p42 = scmp.eq.s32.totalorder %s25, 1
      %p43 = por %p41, %p42
      %p45 = scmp.ne.s32.totalorder %s30, %s44
      %p46 = scmp.eq.s32.totalorder %s25, 0
      %p47 = por %p45, %p46
      %s49 = sadd.s32 %s48, 1
      %p52 = scmp.eq.s32.totalorder %s19, 1
      %p53 = scmp.ne.s32.totalorder %s48, %s50
      %p54 = scmp.eq.s32.totalorder %s19, 0
      %p55 = por %p53, %p54
      %p56 = scmp.ne.s32.totalorder %s48, %s50
      %p57 = scmp.eq.s32.totalorder %s24, 1
      %p58 = por %p56, %p57
      %p59 = scmp.ne.s32.totalorder %s50, %s51
      %p60 = scmp.eq.s32.totalorder %s24, 0
      %p61 = por %p59, %p60
      %p62 = scmp.ne.s32.totalorder %s50, %s51
      %p63 = scmp.eq.s32.totalorder %s25, 1
      %p64 = por %p62, %p63
      %p66 = scmp.ne.s32.totalorder %s51, %s65
      %p67 = scmp.eq.s32.totalorder %s25, 0
      %p68 = por %p66, %p67
      %s69 = ssub.s32 %s19, %s26
      %p70 = scmp.eq.s32.totalorder %s69, 0
      %s72 = sadd.s32 %s71, 1
      %s73 = scalar_select %p70, %s71, %s72
      %p76 = pneg %p70
      %p77 = scmp.eq.s32.totalorder %s19, 1
      %p78 = por %p76, %p77
      %p79 = scmp.ne.s32.totalorder %s71, %s74
      %p80 = scmp.eq.s32.totalorder %s19, 0
      %p81 = por %p79, %p80
      %p82 = scmp.ne.s32.totalorder %s71, %s74
      %p83 = scmp.eq.s32.totalorder %s24, 1
      %p84 = por %p82, %p83
      %p85 = scmp.ne.s32.totalorder %s74, %s75
      %p86 = scmp.eq.s32.totalorder %s24, 0
      %p87 = por %p85, %p86
      %p88 = scmp.ne.s32.totalorder %s74, %s75
      %p89 = scmp.eq.s32.totalorder %s25, 1
      %p90 = por %p88, %p89
      %p92 = scmp.ne.s32.totalorder %s75, %s91
      %p93 = scmp.eq.s32.totalorder %s25, 0
      %p94 = por %p92, %p93
      %s95 = ssub.s32 %s19, %s26
      %p96 = scmp.eq.s32.totalorder %s95, 0
      %s98 = sadd.s32 %s97, 1
      %s99 = scalar_select %p96, %s97, %s98
      %p102 = pneg %p96
      %p103 = scmp.eq.s32.totalorder %s19, 1
      %p104 = por %p102, %p103
      %p105 = scmp.ne.s32.totalorder %s97, %s100
      %p106 = scmp.eq.s32.totalorder %s19, 0
      %p107 = por %p105, %p106
      %p108 = scmp.ne.s32.totalorder %s97, %s100
      %p109 = scmp.eq.s32.totalorder %s24, 1
      %p110 = por %p108, %p109
      %p111 = scmp.ne.s32.totalorder %s100, %s101
      %p112 = scmp.eq.s32.totalorder %s24, 0
      %p113 = por %p111, %p112
      %p114 = scmp.ne.s32.totalorder %s100, %s101
      %p115 = scmp.eq.s32.totalorder %s25, 1
      %p116 = por %p114, %p115
      %p118 = scmp.ne.s32.totalorder %s101, %s117
      %p119 = scmp.eq.s32.totalorder %s25, 0
      %p120 = por %p118, %p119
      %s122 = sadd.s32 %s121, 1
      %p125 = scmp.eq.s32.totalorder %s19, 1
      %p126 = scmp.ne.s32.totalorder %s121, %s123
      %p127 = scmp.eq.s32.totalorder %s19, 0
      %p128 = por %p126, %p127
      %p129 = scmp.ne.s32.totalorder %s121, %s123
      %p130 = scmp.eq.s32.totalorder %s24, 1
      %p131 = por %p129, %p130
      %p132 = scmp.ne.s32.totalorder %s123, %s124
      %p133 = scmp.eq.s32.totalorder %s24, 0
      %p134 = por %p132, %p133
      %p135 = scmp.ne.s32.totalorder %s123, %s124
      %p136 = scmp.eq.s32.totalorder %s25, 1
      %p137 = por %p135, %p136
      %p139 = scmp.ne.s32.totalorder %s124, %s138
      %p140 = scmp.eq.s32.totalorder %s25, 0
      %p141 = por %p139, %p140
      %s143 = sadd.s32 %s142, 1
      %p146 = scmp.eq.s32.totalorder %s19, 1
      %p147 = scmp.ne.s32.totalorder %s142, %s144
      %p148 = scmp.eq.s32.totalorder %s19, 0
      %p149 = por %p147, %p148
      %p150 = scmp.ne.s32.totalorder %s142, %s144
      %p151 = scmp.eq.s32.totalorder %s24, 1
      %p152 = por %p150, %p151
      %p153 = scmp.ne.s32.totalorder %s144, %s145
      %p154 = scmp.eq.s32.totalorder %s24, 0
      %p155 = por %p153, %p154
      %p156 = scmp.ne.s32.totalorder %s144, %s145
      %p157 = scmp.eq.s32.totalorder %s25, 1
      %p158 = por %p156, %p157
      %p160 = scmp.ne.s32.totalorder %s145, %s159
      %p161 = scmp.eq.s32.totalorder %s25, 0
      %p162 = por %p160, %p161
      %s164 = sadd.s32 %s163, 1
      %p167 = scmp.eq.s32.totalorder %s19, 1
      %p168 = scmp.ne.s32.totalorder %s163, %s165
      %p169 = scmp.eq.s32.totalorder %s19, 0
      %p170 = por %p168, %p169
      %p171 = scmp.ne.s32.totalorder %s163, %s165
      %p172 = scmp.eq.s32.totalorder %s24, 1
      %p173 = por %p171, %p172
      %p174 = scmp.ne.s32.totalorder %s165, %s166
      %p175 = scmp.eq.s32.totalorder %s24, 0
      %p176 = por %p174, %p175
      %p177 = scmp.ne.s32.totalorder %s165, %s166
      %p178 = scmp.eq.s32.totalorder %s25, 1
      %p179 = por %p177, %p178
      %p181 = scmp.ne.s32.totalorder %s166, %s180
      %p182 = scmp.eq.s32.totalorder %s25, 0
      %p183 = por %p181, %p182
      %s185 = sadd.s32 %s184, 1
      %p188 = scmp.eq.s32.totalorder %s19, 1
      %p189 = scmp.ne.s32.totalorder %s184, %s186
      %p190 = scmp.eq.s32.totalorder %s19, 0
      %p191 = por %p189, %p190
      %p192 = scmp.ne.s32.totalorder %s184, %s186
      %p193 = scmp.eq.s32.totalorder %s24, 1
      %p194 = por %p192, %p193
      %p195 = scmp.ne.s32.totalorder %s186, %s187
      %p196 = scmp.eq.s32.totalorder %s24, 0
      %p197 = por %p195, %p196
      %p198 = scmp.ne.s32.totalorder %s186, %s187
      %p199 = scmp.eq.s32.totalorder %s25, 1
      %p200 = por %p198, %p199
      %p202 = scmp.ne.s32.totalorder %s187, %s201
      %p203 = scmp.eq.s32.totalorder %s25, 0
      %p204 = por %p202, %p203
      %s206 = sadd.s32 %s205, 1
      %p209 = scmp.eq.s32.totalorder %s19, 1
      %p210 = scmp.ne.s32.totalorder %s205, %s207
      %p211 = scmp.eq.s32.totalorder %s19, 0
      %p212 = por %p210, %p211
      %p213 = scmp.ne.s32.totalorder %s205, %s207
      %p214 = scmp.eq.s32.totalorder %s24, 1
      %p215 = por %p213, %p214
      %p216 = scmp.ne.s32.totalorder %s207, %s208
      %p217 = scmp.eq.s32.totalorder %s24, 0
      %p218 = por %p216, %p217
      %p219 = scmp.ne.s32.totalorder %s207, %s208
      %p220 = scmp.eq.s32.totalorder %s25, 1
      %p221 = por %p219, %p220
      %p223 = scmp.ne.s32.totalorder %s208, %s222
      %p224 = scmp.eq.s32.totalorder %s25, 0
      %p225 = por %p223, %p224
      %s227 = sadd.s32 %s226, 1
      %p230 = scmp.eq.s32.totalorder %s19, 1
      %p231 = scmp.ne.s32.totalorder %s226, %s228
      %p232 = scmp.eq.s32.totalorder %s19, 0
      %p233 = por %p231, %p232
      %p234 = scmp.ne.s32.totalorder %s226, %s228
      %p235 = scmp.eq.s32.totalorder %s24, 1
      %p236 = por %p234, %p235
      %p237 = scmp.ne.s32.totalorder %s228, %s229
      %p238 = scmp.eq.s32.totalorder %s24, 0
      %p239 = por %p237, %p238
      %p240 = scmp.ne.s32.totalorder %s228, %s229
      %p241 = scmp.eq.s32.totalorder %s25, 1
      %p242 = por %p240, %p241
      %p244 = scmp.ne.s32.totalorder %s229, %s243
      %p245 = scmp.eq.s32.totalorder %s25, 0
      %p246 = por %p244, %p245
      %s248 = sadd.s32 %s247, 1
      %p251 = scmp.eq.s32.totalorder %s19, 1
      %p252 = scmp.ne.s32.totalorder %s247, %s249
      %p253 = scmp.eq.s32.totalorder %s19, 0
      %p254 = por %p252, %p253
      %p255 = scmp.ne.s32.totalorder %s247, %s249
      %p256 = scmp.eq.s32.totalorder %s24, 1
      %p257 = por %p255, %p256
      %p258 = scmp.ne.s32.totalorder %s249, %s250
      %p259 = scmp.eq.s32.totalorder %s24, 0
      %p260 = por %p258, %p259
      %p261 = scmp.ne.s32.totalorder %s249, %s250
      %p262 = scmp.eq.s32.totalorder %s25, 1
      %p263 = por %p261, %p262
      %p265 = scmp.ne.s32.totalorder %s250, %s264
      %p266 = scmp.eq.s32.totalorder %s25, 0
      %p267 = por %p265, %p266
      %s268 = ssub.s32 %s19, %s26
      %p269 = scmp.eq.s32.totalorder %s268, 0
      %s271 = sadd.s32 %s270, 1
      %s272 = scalar_select %p269, %s270, %s271
      %p275 = pneg %p269
      %p276 = scmp.eq.s32.totalorder %s19, 1
      %p277 = por %p275, %p276
      %p278 = scmp.ne.s32.totalorder %s270, %s273
      %p279 = scmp.eq.s32.totalorder %s19, 0
      %p280 = por %p278, %p279
      %p281 = scmp.ne.s32.totalorder %s270, %s273
      %p282 = scmp.eq.s32.totalorder %s24, 1
      %p283 = por %p281, %p282
      %p284 = scmp.ne.s32.totalorder %s273, %s274
      %p285 = scmp.eq.s32.totalorder %s24, 0
      %p286 = por %p284, %p285
      %p287 = scmp.ne.s32.totalorder %s273, %s274
      %p288 = scmp.eq.s32.totalorder %s25, 1
      %p289 = por %p287, %p288
      %p291 = scmp.ne.s32.totalorder %s274, %s290
      %p292 = scmp.eq.s32.totalorder %s25, 0
      %p293 = por %p291, %p292
      %p294 = scmp.le.s32.totalorder 1, %s19
      %p295 = scmp.lt.s32.totalorder %s19, 3
      %p296 = pnand %p294, %p295
      %p297 = pneg %p296
      // Predicated region
      $region9: #{_forward.1} parent=5 // pred_check
        _
      $region10: #{_forward.1} parent=5 // pred_check_branch
        %299 = sbr.rel (%p296) target = $region12
      $region11: #{_forward.1} parent=5 // pred_region
        %s300 = ssub.s32 %s19, 1
        // Predicated region
        $region13: #{_forward.1} parent=11 // pred_check
          %p301 = pneg %p40
        $region14: #{_forward.1} parent=11 // pred_check_branch
          %303 = sbr.rel (%p301) target = $region16
        $region15: #{_forward.1} parent=11 // pred_region
          _
        $region16: #{_forward.1} parent=11 // pred_fallthru
          _
        // Predicated region
        $region17: #{_forward.1} parent=11 // pred_check
          %p304 = pneg %p61
        $region18: #{_forward.1} parent=11 // pred_check_branch
          %306 = sbr.rel (%p304) target = $region20
        $region19: #{_forward.1} parent=11 // pred_region
          %s308 = ssub.s32 128, 128
          %309 = vsyncadd [#allocation7], %s308
          %s311 = sshll.u32 %s1, 4
          %s312 = int_to_ptr.vmem [resolvable:$true] %s311
          %314 = dma.vmem_to_smem %s312, 128, [#allocation6], [#allocation7]
        $region20: #{_forward.1} parent=11 // pred_fallthru
          _
        // Predicated region
        $region21: #{_forward.1} parent=11 // pred_check
          %p315 = pneg %p134
        $region22: #{_forward.1} parent=11 // pred_check_branch
          %317 = sbr.rel (%p315) target = $region24
        $region23: #{_forward.1} parent=11 // pred_region
          _
        $region24: #{_forward.1} parent=11 // pred_fallthru
          _
        // Predicated region
        $region25: #{_forward.1} parent=11 // pred_check
          %p318 = pneg %p155
        $region26: #{_forward.1} parent=11 // pred_check_branch
          %320 = sbr.rel (%p318) target = $region28
        $region27: #{_forward.1} parent=11 // pred_region
          _
        $region28: #{_forward.1} parent=11 // pred_fallthru
          _
        // Predicated region
        $region29: #{_forward.1} parent=11 // pred_check
          %p321 = pneg %p176
        $region30: #{_forward.1} parent=11 // pred_check_branch
          %323 = sbr.rel (%p321) target = $region32
        $region31: #{_forward.1} parent=11 // pred_region
          _
        $region32: #{_forward.1} parent=11 // pred_fallthru
          _
        // Predicated region
        $region33: #{_forward.1} parent=11 // pred_check
          %p324 = pneg %p197
        $region34: #{_forward.1} parent=11 // pred_check_branch
          %326 = sbr.rel (%p324) target = $region36
        $region35: #{_forward.1} parent=11 // pred_region
          _
        $region36: #{_forward.1} parent=11 // pred_fallthru
          _
        // Predicated region
        $region37: #{_forward.1} parent=11 // pred_check
          %p327 = pneg %p218
        $region38: #{_forward.1} parent=11 // pred_check_branch
          %329 = sbr.rel (%p327) target = $region40
        $region39: #{_forward.1} parent=11 // pred_region
          _
        $region40: #{_forward.1} parent=11 // pred_fallthru
          _
        // Predicated region
        $region41: #{_forward.1} parent=11 // pred_check
          %p330 = pneg %p239
        $region42: #{_forward.1} parent=11 // pred_check_branch
          %332 = sbr.rel (%p330) target = $region44
        $region43: #{_forward.1} parent=11 // pred_region
          _
        $region44: #{_forward.1} parent=11 // pred_fallthru
          _
        // Predicated region
        $region45: #{_forward.1} parent=11 // pred_check
          %p333 = pneg %p260
        $region46: #{_forward.1} parent=11 // pred_check_branch
          %335 = sbr.rel (%p333) target = $region48
        $region47: #{_forward.1} parent=11 // pred_region
          _
        $region48: #{_forward.1} parent=11 // pred_fallthru
          _
      $region12: #{_forward.1} parent=5 // pred_fallthru
        _
      %p336 = scmp.lt.s32.totalorder %s19, 2
      // Predicated region
      $region49: #{_forward.1} parent=5 // pred_check
        %p337 = pneg %p336
      $region50: #{_forward.1} parent=5 // pred_check_branch
        %339 = sbr.rel (%p337) target = $region52
      $region51: #{_forward.1} parent=5 // pred_region
        // Predicated region
        $region53: #{_forward.1} parent=51 // pred_check
          %p340 = pneg %p81
        $region54: #{_forward.1} parent=51 // pred_check_branch
          %342 = sbr.rel (%p340) target = $region56
        $region55: #{_forward.1} parent=51 // pred_region
          %p343 = scmp.lt.s32.totalorder %s19, 1
          %s344 = scalar_select %p343, %s19, 1
          %s345 = smul.addr %s344, 2
          %s346 = smul.addr %s345, 8
          %s347 = scalar_lea.vmem %s2, %s346
        $region56: #{_forward.1} parent=51 // pred_fallthru
          _
        // Predicated region
        $region57: #{_forward.1} parent=51 // pred_check
          %p348 = pneg %p107
        $region58: #{_forward.1} parent=51 // pred_check_branch
          %350 = sbr.rel (%p348) target = $region60
        $region59: #{_forward.1} parent=51 // pred_region
          %p351 = scmp.lt.s32.totalorder %s19, 1
          %s352 = scalar_select %p351, %s19, 1
          %s353 = smul.addr %s352, 2
          %s354 = smul.addr %s353, 8
          %s355 = scalar_lea.vmem %s3, %s354
        $region60: #{_forward.1} parent=51 // pred_fallthru
          _
      $region52: #{_forward.1} parent=5 // pred_fallthru
        _
      %p356 = scmp.le.s32.totalorder 1, %s19
      %p357 = scmp.lt.s32.totalorder %s19, 3
      %p358 = pnand %p356, %p357
      %p359 = pneg %p358
      // Predicated region
      $region61: #{_forward.1} parent=5 // pred_check
        _
      $region62: #{_forward.1} parent=5 // pred_check_branch
        %361 = sbr.rel (%p358) target = $region64
      $region63: #{_forward.1} parent=5 // pred_region
        %s362 = ssub.s32 %s19, 1
        // Predicated region
        $region65: #{_forward.1} parent=63 // pred_check
          %p363 = pneg %p61
        $region66: #{_forward.1} parent=63 // pred_check_branch
          %365 = sbr.rel (%p363) target = $region68
        $region67: #{_forward.1} parent=63 // pred_region
          %366 = dma.done [#allocation7], 128
        $region68: #{_forward.1} parent=63 // pred_fallthru
          _
        %367 = sfence
        %p368 = pneg %p40
        %p369 = pneg %p37
        %p370 = pneg %p61
        %p371 = pneg %p58
        %p372 = scmp.lt.s32.totalorder %s24, 1
        %s373 = scalar_select %p372, %s24, 1
        %s374 = smul.addr %s373, 2
        %s375 = smul.addr %s374, 8
        %s376 = scalar_lea.vmem %s2, %s375
        %p377 = pneg %p87
        %p378 = pneg %p84
        %p379 = scmp.lt.s32.totalorder %s24, 1
        %s380 = scalar_select %p379, %s24, 1
        %s381 = smul.addr %s380, 2
        %s382 = smul.addr %s381, 8
        %s383 = scalar_lea.vmem %s3, %s382
        %p384 = pneg %p113
        %p385 = pneg %p110
        %p386 = pneg %p134
        %p387 = pneg %p131
        %p388 = pneg %p155
        %p389 = pneg %p152
        %p390 = pneg %p176
        %p391 = pneg %p173
        %p392 = pneg %p197
        %p393 = pneg %p194
        %p394 = pneg %p218
        %p395 = pneg %p215
        %p396 = pneg %p239
        %p397 = pneg %p236
        %p398 = pneg %p260
        %p399 = pneg %p257
        %p400 = pneg %p286
        %p401 = pneg %p283
        %p402 = scmp.lt.s32.totalorder %s24, 1
        %s403 = scalar_select %p402, %s24, 1
        %s404 = smul.addr %s403, 2
        %s405 = smul.addr %s404, 8
        %s406 = scalar_lea.vmem %s11, %s405
        %p407 = scmp.lt.s32.totalorder %s24, 1
        %s408 = scalar_select %p407, %s24, 1
        %s409 = smul.addr %s408, 2
        %s410 = smul.addr %s409, 8
        %s411 = scalar_lea.vmem %s2, %s410
        %p412 = scmp.lt.s32.totalorder %s24, 1
        %s413 = scalar_select %p412, %s24, 1
        %s414 = smul.addr %s413, 2
        %s415 = smul.addr %s414, 8
        %s416 = scalar_lea.vmem %s3, %s415
        %p417 = scmp.lt.s32.totalorder %s24, 1
        %s418 = scalar_select %p417, %s24, 1
        %s419 = smul.addr %s418, 2
        %s420 = smul.addr %s419, 8
        %s421 = scalar_lea.vmem %s11, %s420
        %s422 = sld [smem:[#allocation5]]
        %v423 = vld [vmem:[%s416] sm:$0xff]
        %v424 = vld [vmem:[%s416 + $0x8] sm:$0xff]
        %v425 = vstv %s422
        %v426 = vmul.f32 %v425, %v423
        %v427 = vmul.f32 %v425, %v424
        %s428 = ssub.f32 1.0, %s422
        %v429 = vld [vmem:[%s411] sm:$0xff]
        %v430 = vld [vmem:[%s411 + $0x8] sm:$0xff]
        %v431 = vstv %s428
        %v432 = vmul.f32 %v431, %v429
        %v433 = vmul.f32 %v431, %v430
        %v434 = vadd.f32 %v426, %v432
        %v435 = vadd.f32 %v427, %v433
        %v436 = vld [vmem:[%s5] sm:$0xff]
        %v437 = vld [vmem:[%s8] sm:$0xff]
        %v438 = vld [vmem:[%s8 + $0x8] sm:$0xff]
        %v439 = vld [vmem:[%s8 + $0x10] sm:$0xff]
        %v440 = vld [vmem:[%s8 + $0x18] sm:$0xff]
        %v441 = vld [vmem:[%s6] sm:$0xff]
        %443 = vset.pattern.permute.xlu0 0
        %444 = vperm.xlu0 %443, %v441
        %v445 = vpop.permute.xlu0 %444
        %v447 = vld [vmem:[%s7] sm:$0xff]
        %449 = vset.pattern.permute.xlu0 0
        %450 = vperm.xlu0 %449, %v447
        %v451 = vpop.permute.xlu0 %450
        %v453 = vld [vmem:[%s9] sm:$0xff]
        %455 = vset.pattern.permute.xlu0 0
        %456 = vperm.xlu0 %455, %v453
        %v457 = vpop.permute.xlu0 %456
        %v459 = vld [vmem:[%s10] sm:$0xff]
        %461 = vset.pattern.permute.xlu0 0
        %462 = vperm.xlu0 %461, %v459
        %v463 = vpop.permute.xlu0 %462
        %v465 = vld [vmem:[%s4] sm:$0x3]
        %s466 = scalar_lea.vmem %s4, 2
        %v467 = vld [vmem:[%s466] sm:$0x3]
        %s468 = scalar_lea.vmem %s4, 4
        %v469 = vld [vmem:[%s468] sm:$0x3]
        %s470 = scalar_lea.vmem %s4, 6
        %v471 = vld [vmem:[%s470] sm:$0x3]
        %s472 = scalar_lea.vmem %s4, 10
        %v473 = vld [vmem:[%s472] sm:$0x3]
        %s474 = scalar_lea.vmem %s4, 12
        %v475 = vld [vmem:[%s474] sm:$0x3]
        %s476 = scalar_lea.vmem %s4, 14
        %v477 = vld [vmem:[%s476] sm:$0x3]
        %s478 = scalar_lea.vmem %s4, 16
        %v479 = vld [vmem:[%s478] sm:$0x3]
        loop: start=0, step=1, limit=8
        $region69: #{_forward.1} parent=63 // loop_pre_header
          _
        $region70: #{_forward.1} parent=63 // loop_header
          %s481 = sphi 0, %s485
          %p482 = scmp.ge.s32.totalorder %s481, 8
          %v486 = vphi %v434, %v1097
          %v487 = vphi %v435, %v1098
        $region71: #{_forward.1} parent=63 // loop_header_branch
          %484 = sbr.rel (%p482) target = $region75
        $region72: #{_forward.1} parent=63 // loop_body
          %s488 = smul.u32 %s481, 128
          %s489 = sld [smem:[#allocation6 + %s488]]
          %s490 = sadd.s32 %s488, 1
          %s491 = sld [smem:[#allocation6 + %s490]]
          %492 = vrot.lane.b32.xlu0 %v486, 17
          %v493 = vpop.permute.xlu0 %492
          %494 = vrot.lane.b32.xlu0 %v487, 17
          %v495 = vpop.permute.xlu0 %494
          %v496 = vlaneseq
          %v497 = vand.u32 %v496, 127
          %vm498 = vcmp.lt.s32.totalorder %v497, 17
          %v499 = vsel %vm498, %v493, %v495
          %v500 = vsel %vm498, %v495, %v493
          %v502 = vlaneseq
          %v503 = vshrl.u32 %v502, 7
          %v504 = vsub.s32 0, %v503
          %v505 = vrot.slane %v465, %v504
          %v506 = vlaneseq
          %v507 = vshrl.u32 %v506, 7
          %v508 = vsub.s32 1, %v507
          %v509 = vrot.slane %v465, %v508
          %v512 = vmul.f32 %v500, %v505
          %v513 = vmul.f32 %v499, %v509
          %514 = vst [vmem:[#allocation2] sm:$0xff] %v512
          %515 = vst [vmem:[#allocation2 + $0x8] sm:$0xff] %v513
          %516 = vrot.lane.b32.xlu0 %v486, 16
          %v517 = vpop.permute.xlu0 %516
          %518 = vrot.lane.b32.xlu0 %v487, 16
          %v519 = vpop.permute.xlu0 %518
          %vm520 = vcmp.lt.s32.totalorder %v497, 16
          %v521 = vsel %vm520, %v517, %v519
          %v522 = vsel %vm520, %v519, %v517
          %v524 = vlaneseq
          %v525 = vshrl.u32 %v524, 7
          %v526 = vsub.s32 0, %v525
          %v527 = vrot.slane %v467, %v526
          %v528 = vlaneseq
          %v529 = vshrl.u32 %v528, 7
          %v530 = vsub.s32 1, %v529
          %v531 = vrot.slane %v467, %v530
          %v534 = vmul.f32 %v522, %v527
          %v535 = vmul.f32 %v521, %v531
          %536 = vst [vmem:[#allocation2 + $0x10] sm:$0xff] %v534
          %537 = vst [vmem:[#allocation2 + $0x18] sm:$0xff] %v535
          %538 = vrot.lane.b32.xlu0 %v486, 15
          %v539 = vpop.permute.xlu0 %538
          %540 = vrot.lane.b32.xlu0 %v487, 15
          %v541 = vpop.permute.xlu0 %540
          %vm542 = vcmp.lt.s32.totalorder %v497, 15
          %v543 = vsel %vm542, %v539, %v541
          %v544 = vsel %vm542, %v541, %v539
          %v546 = vlaneseq
          %v547 = vshrl.u32 %v546, 7
          %v548 = vsub.s32 0, %v547
          %v549 = vrot.slane %v469, %v548
          %v550 = vlaneseq
          %v551 = vshrl.u32 %v550, 7
          %v552 = vsub.s32 1, %v551
          %v553 = vrot.slane %v469, %v552
          %v556 = vmul.f32 %v544, %v549
          %v557 = vmul.f32 %v543, %v553
          %558 = vst [vmem:[#allocation2 + $0x20] sm:$0xff] %v556
          %559 = vst [vmem:[#allocation2 + $0x28] sm:$0xff] %v557
          %560 = vrot.lane.b32.xlu0 %v486, 1
          %v561 = vpop.permute.xlu0 %560
          %562 = vrot.lane.b32.xlu0 %v487, 1
          %v563 = vpop.permute.xlu0 %562
          %vm564 = vcmp.lt.s32.totalorder %v497, 1
          %v565 = vsel %vm564, %v561, %v563
          %v566 = vsel %vm564, %v563, %v561
          %v568 = vlaneseq
          %v569 = vshrl.u32 %v568, 7
          %v570 = vsub.s32 0, %v569
          %v571 = vrot.slane %v471, %v570
          %v572 = vlaneseq
          %v573 = vshrl.u32 %v572, 7
          %v574 = vsub.s32 1, %v573
          %v575 = vrot.slane %v471, %v574
          %v578 = vmul.f32 %v566, %v571
          %v579 = vmul.f32 %v565, %v575
          %580 = vst [vmem:[#allocation2 + $0x30] sm:$0xff] %v578
          %581 = vst [vmem:[#allocation2 + $0x38] sm:$0xff] %v579
          %582 = vst [vmem:[#allocation2 + $0x40] sm:$0xff] %v486
          %583 = vst [vmem:[#allocation2 + $0x48] sm:$0xff] %v487
          %584 = vrot.lane.b32.xlu0 %v486, 127
          %v585 = vpop.permute.xlu0 %584
          %586 = vrot.lane.b32.xlu0 %v487, 127
          %v587 = vpop.permute.xlu0 %586
          %vm588 = vcmp.lt.s32.totalorder %v497, 127
          %v589 = vsel %vm588, %v585, %v587
          %v590 = vsel %vm588, %v587, %v585
          %v592 = vlaneseq
          %v593 = vshrl.u32 %v592, 7
          %v594 = vsub.s32 0, %v593
          %v595 = vrot.slane %v473, %v594
          %v596 = vlaneseq
          %v597 = vshrl.u32 %v596, 7
          %v598 = vsub.s32 1, %v597
          %v599 = vrot.slane %v473, %v598
          %v602 = vmul.f32 %v589, %v595
          %v603 = vmul.f32 %v590, %v599
          %604 = vst [vmem:[#allocation2 + $0x50] sm:$0xff] %v602
          %605 = vst [vmem:[#allocation2 + $0x58] sm:$0xff] %v603
          %606 = vrot.lane.b32.xlu0 %v486, 113
          %v607 = vpop.permute.xlu0 %606
          %608 = vrot.lane.b32.xlu0 %v487, 113
          %v609 = vpop.permute.xlu0 %608
          %vm610 = vcmp.lt.s32.totalorder %v497, 113
          %v611 = vsel %vm610, %v607, %v609
          %v612 = vsel %vm610, %v609, %v607
          %v614 = vlaneseq
          %v615 = vshrl.u32 %v614, 7
          %v616 = vsub.s32 0, %v615
          %v617 = vrot.slane %v475, %v616
          %v618 = vlaneseq
          %v619 = vshrl.u32 %v618, 7
          %v620 = vsub.s32 1, %v619
          %v621 = vrot.slane %v475, %v620
          %v624 = vmul.f32 %v611, %v617
          %v625 = vmul.f32 %v612, %v621
          %626 = vst [vmem:[#allocation2 + $0x60] sm:$0xff] %v624
          %627 = vst [vmem:[#allocation2 + $0x68] sm:$0xff] %v625
          %628 = vrot.lane.b32.xlu0 %v486, 112
          %v629 = vpop.permute.xlu0 %628
          %630 = vrot.lane.b32.xlu0 %v487, 112
          %v631 = vpop.permute.xlu0 %630
          %vm632 = vcmp.lt.s32.totalorder %v497, 112
          %v633 = vsel %vm632, %v629, %v631
          %v634 = vsel %vm632, %v631, %v629
          %v636 = vlaneseq
          %v637 = vshrl.u32 %v636, 7
          %v638 = vsub.s32 0, %v637
          %v639 = vrot.slane %v477, %v638
          %v640 = vlaneseq
          %v641 = vshrl.u32 %v640, 7
          %v642 = vsub.s32 1, %v641
          %v643 = vrot.slane %v477, %v642
          %v646 = vmul.f32 %v633, %v639
          %v647 = vmul.f32 %v634, %v643
          %648 = vst [vmem:[#allocation2 + $0x70] sm:$0xff] %v646
          %649 = vst [vmem:[#allocation2 + $0x78] sm:$0xff] %v647
          %650 = vrot.lane.b32.xlu0 %v486, 111
          %v651 = vpop.permute.xlu0 %650
          %652 = vrot.lane.b32.xlu0 %v487, 111
          %v653 = vpop.permute.xlu0 %652
          %vm654 = vcmp.lt.s32.totalorder %v497, 111
          %v655 = vsel %vm654, %v651, %v653
          %v656 = vsel %vm654, %v653, %v651
          %v658 = vlaneseq
          %v659 = vshrl.u32 %v658, 7
          %v660 = vsub.s32 0, %v659
          %v661 = vrot.slane %v479, %v660
          %v662 = vlaneseq
          %v663 = vshrl.u32 %v662, 7
          %v664 = vsub.s32 1, %v663
          %v665 = vrot.slane %v479, %v664
          %v668 = vmul.f32 %v655, %v661
          %v669 = vmul.f32 %v656, %v665
          %670 = vst [vmem:[#allocation2 + $0x80] sm:$0xff] %v668
          %671 = vst [vmem:[#allocation2 + $0x88] sm:$0xff] %v669
          %v672 = vld [vmem:[#allocation2] sm:$0xff]
          %v673 = vld [vmem:[#allocation2 + $0x8] sm:$0xff]
          %v674 = vld [vmem:[#allocation2 + $0x10] sm:$0xff]
          %v675 = vld [vmem:[#allocation2 + $0x18] sm:$0xff]
          %v676 = vld [vmem:[#allocation2 + $0x20] sm:$0xff]
          %v677 = vld [vmem:[#allocation2 + $0x28] sm:$0xff]
          %v678 = vld [vmem:[#allocation2 + $0x30] sm:$0xff]
          %v679 = vld [vmem:[#allocation2 + $0x38] sm:$0xff]
          %v680 = vld [vmem:[#allocation2 + $0x40] sm:$0xff]
          %v681 = vld [vmem:[#allocation2 + $0x48] sm:$0xff]
          %v682 = vld [vmem:[#allocation2 + $0x50] sm:$0xff]
          %v683 = vld [vmem:[#allocation2 + $0x58] sm:$0xff]
          %v684 = vld [vmem:[#allocation2 + $0x60] sm:$0xff]
          %v685 = vld [vmem:[#allocation2 + $0x68] sm:$0xff]
          %v686 = vld [vmem:[#allocation2 + $0x70] sm:$0xff]
          %v687 = vld [vmem:[#allocation2 + $0x78] sm:$0xff]
          %v688 = vld [vmem:[#allocation2 + $0x80] sm:$0xff]
          %v689 = vld [vmem:[#allocation2 + $0x88] sm:$0xff]
          %vm690 = vcmask 588800
          %v692 = vsel %vm690, %v436, 0
          %694 = vmatprep.subr.mxu0 %v673
          %695 = vmatpush1.msra.mxu0 %v672
          %696 = vmatprep.subr.mxu0 %v675
          %697 = vmatpush1.msra.mxu0 %v674
          %698 = vmatprep.subr.mxu0 %v677
          %699 = vmatpush1.msra.mxu0 %v676
          %700 = vmatprep.subr.mxu0 %v679
          %701 = vmatpush1.msra.mxu0 %v678
          %702 = vmatprep.subr.mxu0 %v681
          %703 = vmatpush1.msra.mxu0 %v680
          %704 = vmatprep.subr.mxu0 %v683
          %705 = vmatpush1.msra.mxu0 %v682
          %706 = vmatprep.subr.mxu0 %v685
          %707 = vmatpush1.msra.mxu0 %v684
          %708 = vmatprep.subr.mxu0 %v687
          %709 = vmatpush1.msra.mxu0 %v686
          %710 = vmatprep.subr.mxu0 %v689
          %711 = vmatpush1.msra.mxu0 %v688
          %712 = vmatprep.subr.mxu0 0.0
          %713 = vmatpush1.msra.mxu0 0.0
          %714 = vmatprep.subr.mxu0 0.0
          %715 = vmatpush1.msra.mxu0 0.0
          %716 = vmatprep.subr.mxu0 0.0
          %717 = vmatpush1.msra.mxu0 0.0
          %718 = vmatprep.subr.mxu0 0.0
          %719 = vmatpush1.msra.mxu0 0.0
          %720 = vmatprep.subr.mxu0 0.0
          %721 = vmatpush1.msra.mxu0 0.0
          %722 = vmatprep.subr.mxu0 0.0
          %723 = vmatpush1.msra.mxu0 0.0
          %724 = vmatprep.subr.mxu0 0.0
          %725 = vmatpush1.msra.mxu0 0.0
          %726 = vmatprep.subr.mxu0 0.0
          %727 = vmatpush1.msra.mxu0 0.0
          %728 = vmatprep.subr.mxu0 0.0
          %729 = vmatpush1.msra.mxu0 0.0
          %730 = vmatprep.subr.mxu0 0.0
          %731 = vmatpush1.msra.mxu0 0.0
          %732 = vmatprep.subr.mxu0 0.0
          %733 = vmatpush1.msra.mxu0 0.0
          %734 = vmatprep.subr.mxu0 0.0
          %735 = vmatpush1.msra.mxu0 0.0
          %736 = vmatprep.subr.mxu0 0.0
          %737 = vmatpush1.msra.mxu0 0.0
          %738 = vmatprep.subr.mxu0 0.0
          %739 = vmatpush1.msra.mxu0 0.0
          %740 = vmatprep.subr.mxu0 0.0
          %741 = vmatpush1.msra.mxu0 0.0
          %742 = vmatprep.subr.mxu0 0.0
          %743 = vmatpush1.msra.mxu0 0.0
          %744 = vmatprep.subr.mxu0 0.0
          %745 = vmatpush1.msra.mxu0 0.0
          %746 = vmatprep.subr.mxu0 0.0
          %747 = vmatpush1.msra.mxu0 0.0
          %748 = vmatprep.subr.mxu0 0.0
          %749 = vmatpush1.msra.mxu0 0.0
          %750 = vmatprep.subr.mxu0 0.0
          %751 = vmatpush1.msra.mxu0 0.0
          %752 = vmatprep.subr.mxu0 0.0
          %753 = vmatpush1.msra.mxu0 0.0
          %754 = vmatprep.subr.mxu0 0.0
          %755 = vmatpush1.msra.mxu0 0.0
          %756 = vmatprep.subr.mxu0 0.0
          %757 = vmatpush1.msra.mxu0 0.0
          %758 = vmatprep.mubr.f32.mxu0 0.0
          %759 = vmatmul.mubr.f32.gmra.mrb[0].mxu0 %v692
          %v760 = vpop.f32.mrb[0].mxu0
          %v761 = vadd.f32 %v445, %v760
          %v762 = vpop.f32.mrb[0].mxu0
          %v763 = vadd.f32 %v445, %v762
          %764 = vdwg.mxu0
          %v765 = vstv %s489
          %v766 = vmul.f32 %v765, %v451
          %v767 = vadd.f32 %v761, %v766
          %v768 = vadd.f32 %v763, %v766
          %v769 = vmax.f32 %v767, 0.0
          %v770 = vmax.f32 %v768, 0.0
          %771 = vst [vmem:[#allocation3] sm:$0xff] %v769
          %772 = vst [vmem:[#allocation3 + $0x8] sm:$0xff] %v770
          %v773 = vstv %s491
          %v774 = vmul.f32 %v773, %v451
          %v775 = vadd.f32 %v761, %v774
          %v776 = vadd.f32 %v763, %v774
          %v777 = vmax.f32 %v775, 0.0
          %v778 = vmax.f32 %v776, 0.0
          %779 = vst [vmem:[#allocation3 + $0x10] sm:$0xff] %v777
          %780 = vst [vmem:[#allocation3 + $0x18] sm:$0xff] %v778
          %v781 = vld [vmem:[#allocation3] sm:$0xff]
          %v782 = vld [vmem:[#allocation3 + $0x8] sm:$0xff]
          %v783 = vld [vmem:[#allocation3 + $0x10] sm:$0xff]
          %v784 = vld [vmem:[#allocation3 + $0x18] sm:$0xff]
          %785 = vrot.lane.b32.xlu0 %v781, 17
          %v786 = vpop.permute.xlu0 %785
          %787 = vrot.lane.b32.xlu0 %v783, 17
          %v788 = vpop.permute.xlu0 %787
          %789 = vrot.lane.b32.xlu0 %v782, 17
          %v790 = vpop.permute.xlu0 %789
          %791 = vrot.lane.b32.xlu0 %v784, 17
          %v792 = vpop.permute.xlu0 %791
          %v793 = vsel %vm498, %v786, %v790
          %v794 = vsel %vm498, %v788, %v792
          %v795 = vsel %vm498, %v790, %v786
          %v796 = vsel %vm498, %v792, %v788
          %v797 = vmul.f32 %v795, %v505
          %v798 = vmul.f32 %v793, %v509
          %v799 = vmul.f32 %v796, %v505
          %v800 = vmul.f32 %v794, %v509
          %801 = vst [vmem:[#allocation4] sm:$0xff] %v797
          %802 = vst [vmem:[#allocation4 + $0x8] sm:$0xff] %v798
          %803 = vst [vmem:[#allocation4 + $0x10] sm:$0xff] %v799
          %804 = vst [vmem:[#allocation4 + $0x18] sm:$0xff] %v800
          %805 = vrot.lane.b32.xlu0 %v781, 16
          %v806 = vpop.permute.xlu0 %805
          %807 = vrot.lane.b32.xlu0 %v783, 16
          %v808 = vpop.permute.xlu0 %807
          %809 = vrot.lane.b32.xlu0 %v782, 16
          %v810 = vpop.permute.xlu0 %809
          %811 = vrot.lane.b32.xlu0 %v784, 16
          %v812 = vpop.permute.xlu0 %811
          %v813 = vsel %vm520, %v806, %v810
          %v814 = vsel %vm520, %v808, %v812
          %v815 = vsel %vm520, %v810, %v806
          %v816 = vsel %vm520, %v812, %v808
          %v817 = vmul.f32 %v815, %v527
          %v818 = vmul.f32 %v813, %v531
          %v819 = vmul.f32 %v816, %v527
          %v820 = vmul.f32 %v814, %v531
          %821 = vst [vmem:[#allocation4 + $0x20] sm:$0xff] %v817
          %822 = vst [vmem:[#allocation4 + $0x28] sm:$0xff] %v818
          %823 = vst [vmem:[#allocation4 + $0x30] sm:$0xff] %v819
          %824 = vst [vmem:[#allocation4 + $0x38] sm:$0xff] %v820
          %825 = vrot.lane.b32.xlu0 %v781, 15
          %v826 = vpop.permute.xlu0 %825
          %827 = vrot.lane.b32.xlu0 %v783, 15
          %v828 = vpop.permute.xlu0 %827
          %829 = vrot.lane.b32.xlu0 %v782, 15
          %v830 = vpop.permute.xlu0 %829
          %831 = vrot.lane.b32.xlu0 %v784, 15
          %v832 = vpop.permute.xlu0 %831
          %v833 = vsel %vm542, %v826, %v830
          %v834 = vsel %vm542, %v828, %v832
          %v835 = vsel %vm542, %v830, %v826
          %v836 = vsel %vm542, %v832, %v828
          %v837 = vmul.f32 %v835, %v549
          %v838 = vmul.f32 %v833, %v553
          %v839 = vmul.f32 %v836, %v549
          %v840 = vmul.f32 %v834, %v553
          %841 = vst [vmem:[#allocation4 + $0x40] sm:$0xff] %v837
          %842 = vst [vmem:[#allocation4 + $0x48] sm:$0xff] %v838
          %843 = vst [vmem:[#allocation4 + $0x50] sm:$0xff] %v839
          %844 = vst [vmem:[#allocation4 + $0x58] sm:$0xff] %v840
          %845 = vrot.lane.b32.xlu0 %v781, 1
          %v846 = vpop.permute.xlu0 %845
          %847 = vrot.lane.b32.xlu0 %v783, 1
          %v848 = vpop.permute.xlu0 %847
          %849 = vrot.lane.b32.xlu0 %v782, 1
          %v850 = vpop.permute.xlu0 %849
          %851 = vrot.lane.b32.xlu0 %v784, 1
          %v852 = vpop.permute.xlu0 %851
          %v853 = vsel %vm564, %v846, %v850
          %v854 = vsel %vm564, %v848, %v852
          %v855 = vsel %vm564, %v850, %v846
          %v856 = vsel %vm564, %v852, %v848
          %v857 = vmul.f32 %v855, %v571
          %v858 = vmul.f32 %v853, %v575
          %v859 = vmul.f32 %v856, %v571
          %v860 = vmul.f32 %v854, %v575
          %861 = vst [vmem:[#allocation4 + $0x60] sm:$0xff] %v857
          %862 = vst [vmem:[#allocation4 + $0x68] sm:$0xff] %v858
          %863 = vst [vmem:[#allocation4 + $0x70] sm:$0xff] %v859
          %864 = vst [vmem:[#allocation4 + $0x78] sm:$0xff] %v860
          %865 = vst [vmem:[#allocation4 + $0x80] sm:$0xff] %v781
          %866 = vst [vmem:[#allocation4 + $0x88] sm:$0xff] %v782
          %867 = vst [vmem:[#allocation4 + $0x90] sm:$0xff] %v783
          %868 = vst [vmem:[#allocation4 + $0x98] sm:$0xff] %v784
          %869 = vrot.lane.b32.xlu0 %v781, 127
          %v870 = vpop.permute.xlu0 %869
          %871 = vrot.lane.b32.xlu0 %v783, 127
          %v872 = vpop.permute.xlu0 %871
          %873 = vrot.lane.b32.xlu0 %v782, 127
          %v874 = vpop.permute.xlu0 %873
          %875 = vrot.lane.b32.xlu0 %v784, 127
          %v876 = vpop.permute.xlu0 %875
          %v877 = vsel %vm588, %v870, %v874
          %v878 = vsel %vm588, %v872, %v876
          %v879 = vsel %vm588, %v874, %v870
          %v880 = vsel %vm588, %v876, %v872
          %v881 = vmul.f32 %v877, %v595
          %v882 = vmul.f32 %v879, %v599
          %v883 = vmul.f32 %v878, %v595
          %v884 = vmul.f32 %v880, %v599
          %885 = vst [vmem:[#allocation4 + $0xa0] sm:$0xff] %v881
          %886 = vst [vmem:[#allocation4 + $0xa8] sm:$0xff] %v882
          %887 = vst [vmem:[#allocation4 + $0xb0] sm:$0xff] %v883
          %888 = vst [vmem:[#allocation4 + $0xb8] sm:$0xff] %v884
          %889 = vrot.lane.b32.xlu0 %v781, 113
          %v890 = vpop.permute.xlu0 %889
          %891 = vrot.lane.b32.xlu0 %v783, 113
          %v892 = vpop.permute.xlu0 %891
          %893 = vrot.lane.b32.xlu0 %v782, 113
          %v894 = vpop.permute.xlu0 %893
          %895 = vrot.lane.b32.xlu0 %v784, 113
          %v896 = vpop.permute.xlu0 %895
          %v897 = vsel %vm610, %v890, %v894
          %v898 = vsel %vm610, %v892, %v896
          %v899 = vsel %vm610, %v894, %v890
          %v900 = vsel %vm610, %v896, %v892
          %v901 = vmul.f32 %v897, %v617
          %v902 = vmul.f32 %v899, %v621
          %v903 = vmul.f32 %v898, %v617
          %v904 = vmul.f32 %v900, %v621
          %905 = vst [vmem:[#allocation4 + $0xc0] sm:$0xff] %v901
          %906 = vst [vmem:[#allocation4 + $0xc8] sm:$0xff] %v902
          %907 = vst [vmem:[#allocation4 + $0xd0] sm:$0xff] %v903
          %908 = vst [vmem:[#allocation4 + $0xd8] sm:$0xff] %v904
          %909 = vrot.lane.b32.xlu0 %v781, 112
          %v910 = vpop.permute.xlu0 %909
          %911 = vrot.lane.b32.xlu0 %v783, 112
          %v912 = vpop.permute.xlu0 %911
          %913 = vrot.lane.b32.xlu0 %v782, 112
          %v914 = vpop.permute.xlu0 %913
          %915 = vrot.lane.b32.xlu0 %v784, 112
          %v916 = vpop.permute.xlu0 %915
          %v917 = vsel %vm632, %v910, %v914
          %v918 = vsel %vm632, %v912, %v916
          %v919 = vsel %vm632, %v914, %v910
          %v920 = vsel %vm632, %v916, %v912
          %v921 = vmul.f32 %v917, %v639
          %v922 = vmul.f32 %v919, %v643
          %v923 = vmul.f32 %v918, %v639
          %v924 = vmul.f32 %v920, %v643
          %925 = vst [vmem:[#allocation4 + $0xe0] sm:$0xff] %v921
          %926 = vst [vmem:[#allocation4 + $0xe8] sm:$0xff] %v922
          %927 = vst [vmem:[#allocation4 + $0xf0] sm:$0xff] %v923
          %928 = vst [vmem:[#allocation4 + $0xf8] sm:$0xff] %v924
          %929 = vrot.lane.b32.xlu0 %v781, 111
          %v930 = vpop.permute.xlu0 %929
          %931 = vrot.lane.b32.xlu0 %v783, 111
          %v932 = vpop.permute.xlu0 %931
          %933 = vrot.lane.b32.xlu0 %v782, 111
          %v934 = vpop.permute.xlu0 %933
          %935 = vrot.lane.b32.xlu0 %v784, 111
          %v936 = vpop.permute.xlu0 %935
          %v937 = vsel %vm654, %v930, %v934
          %v938 = vsel %vm654, %v932, %v936
          %v939 = vsel %vm654, %v934, %v930
          %v940 = vsel %vm654, %v936, %v932
          %v941 = vmul.f32 %v937, %v661
          %v942 = vmul.f32 %v939, %v665
          %v943 = vmul.f32 %v938, %v661
          %v944 = vmul.f32 %v940, %v665
          %945 = vst [vmem:[#allocation4 + $0x100] sm:$0xff] %v941
          %946 = vst [vmem:[#allocation4 + $0x108] sm:$0xff] %v942
          %947 = vst [vmem:[#allocation4 + $0x110] sm:$0xff] %v943
          %948 = vst [vmem:[#allocation4 + $0x118] sm:$0xff] %v944
          %v949 = vld [vmem:[#allocation4] sm:$0xff]
          %v950 = vld [vmem:[#allocation4 + $0x8] sm:$0xff]
          %v951 = vld [vmem:[#allocation4 + $0x10] sm:$0xff]
          %v952 = vld [vmem:[#allocation4 + $0x18] sm:$0xff]
          %v953 = vld [vmem:[#allocation4 + $0x20] sm:$0xff]
          %v954 = vld [vmem:[#allocation4 + $0x28] sm:$0xff]
          %v955 = vld [vmem:[#allocation4 + $0x30] sm:$0xff]
          %v956 = vld [vmem:[#allocation4 + $0x38] sm:$0xff]
          %v957 = vld [vmem:[#allocation4 + $0x40] sm:$0xff]
          %v958 = vld [vmem:[#allocation4 + $0x48] sm:$0xff]
          %v959 = vld [vmem:[#allocation4 + $0x50] sm:$0xff]
          %v960 = vld [vmem:[#allocation4 + $0x58] sm:$0xff]
          %v961 = vld [vmem:[#allocation4 + $0x60] sm:$0xff]
          %v962 = vld [vmem:[#allocation4 + $0x68] sm:$0xff]
          %v963 = vld [vmem:[#allocation4 + $0x70] sm:$0xff]
          %v964 = vld [vmem:[#allocation4 + $0x78] sm:$0xff]
          %v965 = vld [vmem:[#allocation4 + $0x80] sm:$0xff]
          %v966 = vld [vmem:[#allocation4 + $0x88] sm:$0xff]
          %v967 = vld [vmem:[#allocation4 + $0x90] sm:$0xff]
          %v968 = vld [vmem:[#allocation4 + $0x98] sm:$0xff]
          %v969 = vld [vmem:[#allocation4 + $0xa0] sm:$0xff]
          %v970 = vld [vmem:[#allocation4 + $0xa8] sm:$0xff]
          %v971 = vld [vmem:[#allocation4 + $0xb0] sm:$0xff]
          %v972 = vld [vmem:[#allocation4 + $0xb8] sm:$0xff]
          %v973 = vld [vmem:[#allocation4 + $0xc0] sm:$0xff]
          %v974 = vld [vmem:[#allocation4 + $0xc8] sm:$0xff]
          %v975 = vld [vmem:[#allocation4 + $0xd0] sm:$0xff]
          %v976 = vld [vmem:[#allocation4 + $0xd8] sm:$0xff]
          %v977 = vld [vmem:[#allocation4 + $0xe0] sm:$0xff]
          %v978 = vld [vmem:[#allocation4 + $0xe8] sm:$0xff]
          %v979 = vld [vmem:[#allocation4 + $0xf0] sm:$0xff]
          %v980 = vld [vmem:[#allocation4 + $0xf8] sm:$0xff]
          %v981 = vld [vmem:[#allocation4 + $0x100] sm:$0xff]
          %v982 = vld [vmem:[#allocation4 + $0x108] sm:$0xff]
          %v983 = vld [vmem:[#allocation4 + $0x110] sm:$0xff]
          %v984 = vld [vmem:[#allocation4 + $0x118] sm:$0xff]
          %vm985 = vcmask 130048
          %v987 = vsel %vm985, %v438, 0
          %v990 = vsel %vm985, %v440, 0
          %992 = vmatprep.subr.mxu0 %v950
          %993 = vmatpush1.msra.mxu0 %v949
          %994 = vmatprep.subr.mxu0 %v952
          %995 = vmatpush1.msra.mxu0 %v951
          %996 = vmatprep.subr.mxu0 %v954
          %997 = vmatpush1.msra.mxu0 %v953
          %998 = vmatprep.subr.mxu0 %v956
          %999 = vmatpush1.msra.mxu0 %v955
          %1000 = vmatprep.subr.mxu0 %v958
          %1001 = vmatpush1.msra.mxu0 %v957
          %1002 = vmatprep.subr.mxu0 %v960
          %1003 = vmatpush1.msra.mxu0 %v959
          %1004 = vmatprep.subr.mxu0 %v962
          %1005 = vmatpush1.msra.mxu0 %v961
          %1006 = vmatprep.subr.mxu0 %v964
          %1007 = vmatpush1.msra.mxu0 %v963
          %1008 = vmatprep.subr.mxu0 %v966
          %1009 = vmatpush1.msra.mxu0 %v965
          %1010 = vmatprep.subr.mxu0 %v968
          %1011 = vmatpush1.msra.mxu0 %v967
          %1012 = vmatprep.subr.mxu0 %v970
          %1013 = vmatpush1.msra.mxu0 %v969
          %1014 = vmatprep.subr.mxu0 %v972
          %1015 = vmatpush1.msra.mxu0 %v971
          %1016 = vmatprep.subr.mxu0 %v974
          %1017 = vmatpush1.msra.mxu0 %v973
          %1018 = vmatprep.subr.mxu0 %v976
          %1019 = vmatpush1.msra.mxu0 %v975
          %1020 = vmatprep.subr.mxu0 %v978
          %1021 = vmatpush1.msra.mxu0 %v977
          %1022 = vmatprep.subr.mxu0 %v980
          %1023 = vmatpush1.msra.mxu0 %v979
          %1024 = vmatprep.subr.mxu0 %v982
          %1025 = vmatpush1.msra.mxu0 %v981
          %1026 = vmatprep.subr.mxu0 %v984
          %1027 = vmatpush1.msra.mxu0 %v983
          %1028 = vmatprep.subr.mxu0 0.0
          %1029 = vmatpush1.msra.mxu0 0.0
          %1030 = vmatprep.subr.mxu0 0.0
          %1031 = vmatpush1.msra.mxu0 0.0
          %1032 = vmatprep.subr.mxu0 0.0
          %1033 = vmatpush1.msra.mxu0 0.0
          %1034 = vmatprep.subr.mxu0 0.0
          %1035 = vmatpush1.msra.mxu0 0.0
          %1036 = vmatprep.subr.mxu0 0.0
          %1037 = vmatpush1.msra.mxu0 0.0
          %1038 = vmatprep.subr.mxu0 0.0
          %1039 = vmatpush1.msra.mxu0 0.0
          %1040 = vmatprep.subr.mxu0 0.0
          %1041 = vmatpush1.msra.mxu0 0.0
          %1042 = vmatprep.subr.mxu0 0.0
          %1043 = vmatpush1.msra.mxu0 0.0
          %1044 = vmatprep.subr.mxu0 0.0
          %1045 = vmatpush1.msra.mxu0 0.0
          %1046 = vmatprep.subr.mxu0 0.0
          %1047 = vmatpush1.msra.mxu0 0.0
          %1048 = vmatprep.subr.mxu0 0.0
          %1049 = vmatpush1.msra.mxu0 0.0
          %1050 = vmatprep.subr.mxu0 0.0
          %1051 = vmatpush1.msra.mxu0 0.0
          %1052 = vmatprep.subr.mxu0 0.0
          %1053 = vmatpush1.msra.mxu0 0.0
          %1054 = vmatprep.subr.mxu0 0.0
          %1055 = vmatpush1.msra.mxu0 0.0
          %1056 = vmatprep.mubr.f32.mxu0 %v987
          %1057 = vmatmul.mubr.f32.gmra.mrb[0].mxu0 %v437
          %v1058 = vpop.f32.mrb[0].mxu0
          %v1059 = vadd.f32 0.0, %v1058
          %v1060 = vpop.f32.mrb[0].mxu0
          %v1061 = vadd.f32 0.0, %v1060
          %1062 = vmatprep.mubr.f32.mxu0 %v990
          %1063 = vmatmul.mubr.f32.gmra.mrb[0].mxu0 %v439
          %v1064 = vpop.f32.mrb[0].mxu0
          %v1065 = vadd.f32 0.0, %v1064
          %v1066 = vpop.f32.mrb[0].mxu0
          %v1067 = vadd.f32 0.0, %v1066
          %1068 = vdwg.mxu0
          %v1069 = vadd.f32 %v1059, %v457
          %v1070 = vadd.f32 %v1061, %v457
          %v1071 = vmul.f32 %v765, %v463
          %v1072 = vadd.f32 %v1069, %v1071
          %v1073 = vadd.f32 %v1070, %v1071
          %v1074 = vadd.f32 %v1065, %v457
          %v1075 = vadd.f32 %v1067, %v457
          %v1076 = vmul.f32 %v773, %v463
          %v1077 = vadd.f32 %v1074, %v1076
          %v1078 = vadd.f32 %v1075, %v1076
          %s1079 = ssub.f32 1.0, %s489
          %v1080 = vstv %s1079
          %v1081 = vmul.f32 %v1080, %v1072
          %v1082 = vmul.f32 %v1080, %v1073
          %v1083 = vmul.f32 %v765, %v434
          %v1084 = vmul.f32 %v765, %v435
          %v1085 = vadd.f32 %v1081, %v1083
          %v1086 = vadd.f32 %v1082, %v1084
          %s1087 = ssub.f32 1.0, %s491
          %v1088 = vstv %s1087
          %v1089 = vmul.f32 %v1088, %v1077
          %v1090 = vmul.f32 %v1088, %v1078
          %v1091 = vmul.f32 %v773, %v434
          %v1092 = vmul.f32 %v773, %v435
          %v1093 = vadd.f32 %v1089, %v1091
          %v1094 = vadd.f32 %v1090, %v1092
          %v1095 = vsub.f32 %v486, %v1085
          %v1096 = vsub.f32 %v487, %v1086
          %v1097 = vadd.f32 %v1095, %v1093
          %v1098 = vadd.f32 %v1096, %v1094
        $region73: #{_forward.1} parent=63 // loop_footer
          %s485 = sadd.s32 1, %s481
        $region74: #{_forward.1} parent=63 // loop_footer_branch
          %480 = sbr.rel target = $region70
        $region75: #{_forward.1} parent=63 // loop_exit
          _
        %1099 = vst [vmem:[%s421] sm:$0xff] %v486
        %1100 = vst [vmem:[%s421 + $0x8] sm:$0xff] %v487
        %p1101 = scmp.lt.s32.totalorder %s24, 1
        %s1102 = scalar_select %p1101, %s24, 1
        %s1103 = smul.addr %s1102, 2
        %s1104 = smul.addr %s1103, 8
        %s1105 = scalar_lea.vmem %s11, %s1104
        // Predicated region
        $region76: #{_forward.1} parent=63 // pred_check
          %p1106 = pneg %p283
        $region77: #{_forward.1} parent=63 // pred_check_branch
          %1108 = sbr.rel (%p1106) target = $region79
        $region78: #{_forward.1} parent=63 // pred_region
          _
        $region79: #{_forward.1} parent=63 // pred_fallthru
          _
      $region64: #{_forward.1} parent=5 // pred_fallthru
        _
      %p1109 = scmp.le.s32.totalorder 2, %s19
      // Predicated region
      $region80: #{_forward.1} parent=5 // pred_check
        %p1110 = pneg %p1109
      $region81: #{_forward.1} parent=5 // pred_check_branch
        %1112 = sbr.rel (%p1110) target = $region83
      $region82: #{_forward.1} parent=5 // pred_region
        %s1113 = ssub.s32 %s19, 2
        // Predicated region
        $region84: #{_forward.1} parent=82 // pred_check
          %p1114 = pneg %p289
        $region85: #{_forward.1} parent=82 // pred_check_branch
          %1116 = sbr.rel (%p1114) target = $region87
        $region86: #{_forward.1} parent=82 // pred_region
          %p1117 = scmp.lt.s32.totalorder %s25, 1
          %s1118 = scalar_select %p1117, %s25, 1
          %s1119 = smul.addr %s1118, 2
          %s1120 = smul.addr %s1119, 8
          %s1121 = scalar_lea.vmem %s11, %s1120
        $region87: #{_forward.1} parent=82 // pred_fallthru
          _
      $region83: #{_forward.1} parent=5 // pred_fallthru
        _
    $region6: #{_forward.1} parent=1 // loop_footer
      %s23 = sadd.s32 1, %s19
    $region7: #{_forward.1} parent=1 // loop_footer_branch
      %18 = sbr.rel target = $region3
    $region8: #{_forward.1} parent=1 // loop_exit
      _
    %1122 = vsyncpa [#allocation7], 1
    %s1123 = scalar_lea.sflag [#allocation7], 1
    %1124 = vsyncpa %s1123, 1

</llo_original>
